<compile_context>
chip_gen: v7x
topology: tpu7x:2x2x1
jax: 0.10.0
libtpu: 0.0.40
codegen_flags: <defaults>
</compile_context>

<pallas_src>
import functools
import math

import jax
import jax.numpy as jnp
from jax.experimental import pallas as pl
from jax.experimental.pallas import tpu as pltpu

LN_EPS = 1e-5   # PyTorch nn.LayerNorm default
LANE = 128


def _round_up(x, m):
    return (x + m - 1) // m * m


# ----------------------------------- kernel -----------------------------------

def transformer_layer_kernel(
    x_ref,      # (1, S, Ep)   f32   feature dim zero-padded to Ep (lane multiple)
    wqkv_ref,   # (Ep, 3Ep)    bf16  fused (sa_proj @ mha_in_proj), scale folded into Q
    bqkv_ref,   # (1, 3Ep)     f32
    wo_ref,     # (Ep, Ep)     bf16  fused (mha_out_proj @ sa_out_proj)
    bo_ref,     # (1, Ep)      f32
    w1_ref,     # (Ep, Fp)     bf16  linear1
    b1_ref,     # (1, Fp)      f32
    w2_ref,     # (Fp, Ep)     bf16  linear2
    b2_ref,     # (1, Ep)      f32
    ln_ref,     # (4, Ep)      f32   [norm1.g, norm1.b, norm2.g, norm2.b] (pads = 0)
    o_ref,      # (1, S, Ep)   f32
    *,
    e_true,     # true (unpadded) feature width, python float
):
    Ep = x_ref.shape[-1]
    inv_e = 1.0 / e_true

    def layernorm(z, gamma, beta):
        # Independent sum / sum-of-squares reductions (overlap on the XLU); divide by the
        # TRUE feature width so zero-padded lanes don't skew the statistics.  gamma/beta
        # pads are zero so padded lanes stay exactly zero after normalization.
        mu = jnp.sum(z, axis=-1, keepdims=True) * inv_e
        ms = jnp.sum(z * z, axis=-1, keepdims=True) * inv_e
        var = ms - mu * mu
        return (z - mu) * jax.lax.rsqrt(var + LN_EPS) * gamma + beta

    x = x_ref[0]                                  # (S, Ep) f32, padded lanes are zero
    xb = x.astype(jnp.bfloat16)

    # --- fused Q/K/V: one wide (S, 3Ep) MXU matmul, then 128-aligned (free) slices ---
    qkv = jnp.dot(xb, wqkv_ref[...], preferred_element_type=jnp.float32) + bqkv_ref[...]
    Q = qkv[:, 0 * Ep:1 * Ep]                     # 1/sqrt(E) already folded into Q weight/bias
    K = qkv[:, 1 * Ep:2 * Ep]
    V = qkv[:, 2 * Ep:3 * Ep]

    # --- single-head attention, NT matmul (no materialized K.T), stabilized softmax ---
    s = jax.lax.dot_general(
        Q.astype(jnp.bfloat16), K.astype(jnp.bfloat16),
        dimension_numbers=(((1,), (1,)), ((), ())),
        preferred_element_type=jnp.float32)                              # (S, S)
    s = s - jnp.max(s, axis=-1, keepdims=True)
    p = jnp.exp(s)
    inv = pl.reciprocal(jnp.sum(p, axis=-1, keepdims=True), approx=True)  # EUP slot
    attn = (p * inv).astype(jnp.bfloat16)
    ctx = jnp.dot(attn, V.astype(jnp.bfloat16), preferred_element_type=jnp.float32)

    # --- fused out-projection (MHA out_proj followed by SelfAttention out_proj) ---
    y = jnp.dot(ctx.astype(jnp.bfloat16), wo_ref[...],
                preferred_element_type=jnp.float32) + bo_ref[...]

    # --- residual + norm1 ---
    # TODO(synk): Dropout layers are identity here (inference semantics); no RNG masking.
    src1 = layernorm(x + y, ln_ref[0:1], ln_ref[1:2])

    # --- feed-forward: linear2(relu(linear1(src))) ---
    h = jnp.dot(src1.astype(jnp.bfloat16), w1_ref[...],
                preferred_element_type=jnp.float32) + b1_ref[...]
    h = jnp.maximum(h, 0.0)
    ff = jnp.dot(h.astype(jnp.bfloat16), w2_ref[...],
                 preferred_element_type=jnp.float32) + b2_ref[...]

    # --- residual + norm2, lane-dense store (Ep % 128 == 0) ---
    o_ref[0] = layernorm(src1 + ff, ln_ref[2:3], ln_ref[3:4])


# ----------------------------------- wrapper -----------------------------------

def _weight_bytes(Ep, Fp):
    bf16_w = 2 * (Ep * 3 * Ep + Ep * Ep + Ep * Fp + Fp * Ep)
    f32_small = 4 * (3 * Ep + Ep + Fp + Ep + 4 * Ep)
    return bf16_w + f32_small


def _vmem_limits(S, Ep, Fp):
    """(vmem_limit_bytes for this kernel, overall generation-aware VMEM budget)."""
    try:
        cap = pltpu.get_tpu_info().vmem_capacity_bytes
    except Exception:
        cap = 64 * 1024 * 1024            # conservative default (v7x physical VMEM)
    budget = int(cap) * 3 // 4            # 25% headroom for compiler/internal scratch
    acts = 4 * (4 * S * Ep + 3 * S * Ep + S * S + S * Fp)   # f32 intermediates (rough)
    io = 4 * 2 * (2 * S * Ep)                               # double-buffered x / out blocks
    need = 2 * (_weight_bytes(Ep, Fp) + acts + io)          # 2x headroom
    limit = min(max(need, 16 * 1024 * 1024), budget)
    return int(limit), int(budget)


def _make_call(B, S, Ep, Fp, e_true, resident_weights, vmem_limit):
    if resident_weights:
        def wspec(shape):
            # Grid-invariant weights: single whole-array VMEM-resident copy, no per-step
            # double-buffering and no re-DMA across grid steps.
            return pl.BlockSpec(memory_space=pltpu.MemorySpace.VMEM)
    else:
        def wspec(shape):
            # Streamed fallback for large weights: constant block index (no re-DMA) and a
            # single buffer so constant blocks are not double-buffered.
            # TODO(synk): for very large E/F, tile QKV/FFN over an 'arbitrary' K/F grid axis
            # with an f32 VMEM accumulator instead of whole-array blocks.
            n = len(shape)
            return pl.BlockSpec(shape, lambda b, _n=n: (0,) * _n,
                                pipeline_mode=pl.Buffered(1))

    in_specs = [
        pl.BlockSpec((1, S, Ep), lambda b: (b, 0, 0)),   # x  (lane-dense: Ep % 128 == 0)
        wspec((Ep, 3 * Ep)),                             # wqkv
        wspec((1, 3 * Ep)),                              # bqkv
        wspec((Ep, Ep)),                                 # wo
        wspec((1, Ep)),                                  # bo
        wspec((Ep, Fp)),                                 # w1
        wspec((1, Fp)),                                  # b1
        wspec((Fp, Ep)),                                 # w2
        wspec((1, Ep)),                                  # b2
        wspec((4, Ep)),                                  # layernorm params
    ]
    out_specs = pl.BlockSpec((1, S, Ep), lambda b: (b, 0, 0))

    return pl.pallas_call(
        functools.partial(transformer_layer_kernel, e_true=e_true),
        out_shape=jax.ShapeDtypeStruct((B, S, Ep), jnp.float32),
        grid_spec=pltpu.PrefetchScalarGridSpec(
            num_scalar_prefetch=0,
            grid=(B,),
            in_specs=in_specs,
            out_specs=out_specs,
        ),
        compiler_params=pltpu.CompilerParams(
            # B >= 2 keeps both v7x TensorCores busy; on single-TC v5e/v6e the per-step
            # overhead (~0.35 us) is negligible at these block sizes.
            dimension_semantics=("parallel",),
            vmem_limit_bytes=vmem_limit,
        ),
    )


def transformer_layer(src, fused):
    B, S, E = src.shape
    Ep = fused["wo"].shape[0]
    Fp = fused["w1"].shape[1]

    # Lane-dense I/O: zero-pad the feature dim (layout plumbing only; padded lanes stay
    # exactly zero through every kernel stage, see fuse_params / in-kernel layernorm).
    src_p = src if Ep == E else jnp.pad(src, ((0, 0), (0, 0), (0, Ep - E)))

    vmem_limit, vmem_budget = _vmem_limits(S, Ep, Fp)
    # Explicit size gate (no silent try/except): weights stay VMEM-resident only if they
    # comfortably fit within a third of the generation's VMEM budget.
    resident = _weight_bytes(Ep, Fp) <= vmem_budget // 3

    call = _make_call(B, S, Ep, Fp, float(E), resident, vmem_limit)
    out_p = call(src_p, fused["wqkv"], fused["bqkv"], fused["wo"], fused["bo"],
                 fused["w1"], fused["b1"], fused["w2"], fused["b2"], fused["ln"])
    return out_p[..., :E]


# --------------------- parameter init, offline fusion, reference ---------------------

def init_params(key, E, F_):
    ks = jax.random.split(key, 16)

    def xavier(k, fan_in, fan_out, gain=1.0):
        lim = gain * math.sqrt(6.0 / (fan_in + fan_out))
        return jax.random.uniform(k, (fan_in, fan_out), jnp.float32, -lim, lim)

    def bias(k, fan_in, n):
        lim = 1.0 / math.sqrt(fan_in)
        return jax.random.uniform(k, (n,), jnp.float32, -lim, lim)

    g = 1.0 / math.sqrt(2.0)
    return {
        # SelfAttention q/k/v/out projections (stored (in, out): kernel computes x @ W + b)
        "wsa": jnp.stack([xavier(ks[0], E, E, g), xavier(ks[1], E, E, g), xavier(ks[2], E, E, g)]),
        "bsa": jnp.stack([bias(ks[3], E, E), bias(ks[4], E, E), bias(ks[5], E, E)]),
        # nn.MultiheadAttention in_proj (q/k/v slices, zero bias) and out_proj (zero bias)
        "wmi": jnp.stack([xavier(ks[6], E, E), xavier(ks[7], E, E), xavier(ks[8], E, E)]),
        "bmi": jnp.zeros((3, E), jnp.float32),
        "wmo": xavier(ks[9], E, E),
        "bmo": jnp.zeros((1, E), jnp.float32),
        "wso": xavier(ks[10], E, E),
        "bso": jnp.zeros((1, E), jnp.float32),
        # FFN
        "w1": xavier(ks[11], E, F_),
        "b1": bias(ks[12], E, F_).reshape(1, F_),
        "w2": xavier(ks[13], F_, E),
        "b2": bias(ks[14], F_, E).reshape(1, E),
        # LayerNorms
        "ln": jnp.stack([jnp.ones(E), jnp.zeros(E), jnp.ones(E), jnp.zeros(E)]).astype(jnp.float32),
    }


def fuse_params(p, lane=LANE, wdtype=jnp.bfloat16):
    """Offline fusion of back-to-back projections (f32, single cast) + lane padding."""
    E = p["wmo"].shape[0]
    F_ = p["w1"].shape[1]
    Ep = _round_up(E, lane)
    Fp = _round_up(F_, lane)

    scale = 1.0 / math.sqrt(E)                     # MHA scaling, folded into fused Q proj
    wq = (p["wsa"][0] @ p["wmi"][0]) * scale
    bq = (p["bsa"][0] @ p["wmi"][0] + p["bmi"][0]) * scale
    wk = p["wsa"][1] @ p["wmi"][1]
    bk = p["bsa"][1] @ p["wmi"][1] + p["bmi"][1]
    wv = p["wsa"][2] @ p["wmi"][2]
    bv = p["bsa"][2] @ p["wmi"][2] + p["bmi"][2]
    wo = p["wmo"] @ p["wso"]                       # MHA out_proj followed by SA out_proj
    bo = p["bmo"][0] @ p["wso"] + p["bso"][0]

    def pad2(w, r, c):
        return jnp.pad(w, ((0, r - w.shape[0]), (0, c - w.shape[1])))

    def pad1(v, n):
        return jnp.pad(v, (0, n - v.shape[0]))

    # Per-projection padding so Q/K/V live at 128-aligned column offsets 0, Ep, 2*Ep.
    wqkv = jnp.concatenate([pad2(wq, Ep, Ep), pad2(wk, Ep, Ep), pad2(wv, Ep, Ep)], axis=1)
    bqkv = jnp.concatenate([pad1(bq, Ep), pad1(bk, Ep), pad1(bv, Ep)])[None, :]

    return {
        "wqkv": wqkv.astype(wdtype),                                   # (Ep, 3Ep)
        "bqkv": bqkv.astype(jnp.float32),                              # (1, 3Ep)
        "wo": pad2(wo, Ep, Ep).astype(wdtype),                         # (Ep, Ep)
        "bo": pad1(bo, Ep)[None, :].astype(jnp.float32),               # (1, Ep)
        "w1": pad2(p["w1"], Ep, Fp).astype(wdtype),                    # (Ep, Fp)
        "b1": pad1(p["b1"][0], Fp)[None, :].astype(jnp.float32),       # (1, Fp)
        "w2": pad2(p["w2"], Fp, Ep).astype(wdtype),                    # (Fp, Ep)
        "b2": pad1(p["b2"][0], Ep)[None, :].astype(jnp.float32),       # (1, Ep)
        # gamma/beta pads are zero -> padded lanes stay zero after each LayerNorm
        "ln": jnp.stack([pad1(p["ln"][i], Ep) for i in range(4)]).astype(jnp.float32),
    }


def _layernorm_ref(x, gamma, beta):
    mu = jnp.mean(x, axis=-1, keepdims=True)
    var = jnp.mean((x - mu) ** 2, axis=-1, keepdims=True)
    return (x - mu) * jax.lax.rsqrt(var + LN_EPS) * gamma + beta


def reference(src, p):
    """Pure-JAX f32 reference of the ORIGINAL (unfused, unpadded) module math."""
    E = src.shape[-1]
    q = src @ p["wsa"][0] + p["bsa"][0]
    k = src @ p["wsa"][1] + p["bsa"][1]
    v = src @ p["wsa"][2] + p["bsa"][2]
    Q = q @ p["wmi"][0] + p["bmi"][0]
    K = k @ p["wmi"][1] + p["bmi"][1]
    V = v @ p["wmi"][2] + p["bmi"][2]
    scores = (Q / math.sqrt(E)) @ jnp.swapaxes(K, -1, -2)
    attn = jax.nn.softmax(scores, axis=-1)
    ctx = attn @ V
    y = ctx @ p["wmo"] + p["bmo"][0]
    y = y @ p["wso"] + p["bso"][0]
    s = _layernorm_ref(src + y, p["ln"][0], p["ln"][1])
    h = jax.nn.relu(s @ p["w1"] + p["b1"][0])
    ff = h @ p["w2"] + p["b2"][0]
    return _layernorm_ref(s + ff, p["ln"][2], p["ln"][3])


if __name__ == "__main__":
    B, S, E, FF = 2, 8, 32, 64          # batch, seq, d_model, dim_feedforward
    key = jax.random.PRNGKey(0)
    k_x, k_p = jax.random.split(key)

    src = jax.random.normal(k_x, (B, S, E), jnp.float32)
    params = init_params(k_p, E, FF)
    fused = fuse_params(params)

    out = jax.block_until_ready(transformer_layer(src, fused))

    ref = reference(src, params)
    assert out.shape == (B, S, E)
    # Kernel uses fused bf16 weights/activations (f32 accumulation) and an approx softmax
    # reciprocal; compare against the unfused f32 reference with a tolerance that covers
    # bf16 rounding but would catch any fusion/padding/algebra bug (O(1) errors).
    err = float(jnp.max(jnp.abs(out - ref)))
    assert err < 5e-2, f"mismatch vs reference: max abs err {err}"
    print("KERNEL_OK")
</pallas_src>

<mosaic_0001>
module attributes {stable_mosaic.version = 11 : i64} {
  func.func @transformer_layer_kernel(%arg0: i32, %arg1: memref<1x8x128xf32, #tpu.memory_space<vmem>>, %arg2: memref<128x384xbf16, #tpu.memory_space<vmem>>, %arg3: memref<1x384xf32, #tpu.memory_space<vmem>>, %arg4: memref<128x128xbf16, #tpu.memory_space<vmem>>, %arg5: memref<1x128xf32, #tpu.memory_space<vmem>>, %arg6: memref<128x128xbf16, #tpu.memory_space<vmem>>, %arg7: memref<1x128xf32, #tpu.memory_space<vmem>>, %arg8: memref<128x128xbf16, #tpu.memory_space<vmem>>, %arg9: memref<1x128xf32, #tpu.memory_space<vmem>>, %arg10: memref<4x128xf32, #tpu.memory_space<vmem>>, %arg11: memref<1x8x128xf32, #tpu.memory_space<vmem>>) attributes {dimension_semantics = [#tpu.dimension_semantics<parallel>], iteration_bounds = array<i64: 2>, scalar_prefetch = 0 : i64, scratch_operands = 0 : i64, tpu.core_type = #tpu.core_type<tc>, window_params = [{transform_indices = @transform_0, window_bounds = array<i64: 1, 8, 128>}, {pipeline_mode = #tpu.pipeline_mode<synchronous>, transform_indices = @transform_1, window_bounds = array<i64: 128, 384>}, {pipeline_mode = #tpu.pipeline_mode<synchronous>, transform_indices = @transform_2, window_bounds = array<i64: 1, 384>}, {pipeline_mode = #tpu.pipeline_mode<synchronous>, transform_indices = @transform_3, window_bounds = array<i64: 128, 128>}, {pipeline_mode = #tpu.pipeline_mode<synchronous>, transform_indices = @transform_4, window_bounds = array<i64: 1, 128>}, {pipeline_mode = #tpu.pipeline_mode<synchronous>, transform_indices = @transform_5, window_bounds = array<i64: 128, 128>}, {pipeline_mode = #tpu.pipeline_mode<synchronous>, transform_indices = @transform_6, window_bounds = array<i64: 1, 128>}, {pipeline_mode = #tpu.pipeline_mode<synchronous>, transform_indices = @transform_7, window_bounds = array<i64: 128, 128>}, {pipeline_mode = #tpu.pipeline_mode<synchronous>, transform_indices = @transform_8, window_bounds = array<i64: 1, 128>}, {pipeline_mode = #tpu.pipeline_mode<synchronous>, transform_indices = @transform_9, window_bounds = array<i64: 4, 128>}, {transform_indices = @transform_10, window_bounds = array<i64: 1, 8, 128>}]} {
    %c0 = arith.constant 0 : index
    %c0_0 = arith.constant 0 : index
    %c0_1 = arith.constant 0 : index
    %0 = vector.load %arg1[%c0, %c0_0, %c0_1] : memref<1x8x128xf32, #tpu.memory_space<vmem>>, vector<1x8x128xf32>
    %1 = vector.shape_cast %0 : vector<1x8x128xf32> to vector<8x128xf32>
    %2 = arith.truncf %1 : vector<8x128xf32> to vector<8x128xbf16>
    %c0_2 = arith.constant 0 : index
    %c0_3 = arith.constant 0 : index
    %3 = vector.load %arg2[%c0_2, %c0_3] : memref<128x384xbf16, #tpu.memory_space<vmem>>, vector<128x384xbf16>
    %cst = arith.constant dense<0.000000e+00> : vector<8x384xf32>
    %4 = tpu.matmul %2, %3, %cst {dimension_numbers = #tpu.dot_dimension_numbers<[1], [0], [0], [1], [0, 0, 1, 1], [], []>} : vector<8x128xbf16>, vector<128x384xbf16>, vector<8x384xf32> -> vector<8x384xf32>
    %c0_4 = arith.constant 0 : index
    %c0_5 = arith.constant 0 : index
    %5 = vector.load %arg3[%c0_4, %c0_5] : memref<1x384xf32, #tpu.memory_space<vmem>>, vector<1x384xf32>
    %6 = vector.broadcast %5 : vector<1x384xf32> to vector<8x384xf32>
    %7 = arith.addf %4, %6 : vector<8x384xf32>
    %8 = vector.extract_strided_slice %7 {offsets = [0, 0], sizes = [8, 128], strides = [1, 1]} : vector<8x384xf32> to vector<8x128xf32>
    %9 = vector.extract_strided_slice %7 {offsets = [0, 128], sizes = [8, 128], strides = [1, 1]} : vector<8x384xf32> to vector<8x128xf32>
    %10 = vector.extract_strided_slice %7 {offsets = [0, 256], sizes = [8, 128], strides = [1, 1]} : vector<8x384xf32> to vector<8x128xf32>
    %11 = arith.truncf %8 : vector<8x128xf32> to vector<8x128xbf16>
    %12 = arith.truncf %9 : vector<8x128xf32> to vector<8x128xbf16>
    %cst_6 = arith.constant dense<0.000000e+00> : vector<8x8xf32>
    %13 = tpu.matmul %11, %12, %cst_6 {dimension_numbers = #tpu.dot_dimension_numbers<[1], [1], [0], [0], [0, 0, 1, 0], [], []>} : vector<8x128xbf16>, vector<8x128xbf16>, vector<8x8xf32> -> vector<8x8xf32>
    %cst_7 = arith.constant dense<0xFF800000> : vector<8xf32>
    %14 = vector.multi_reduction <maximumf>, %13, %cst_7 [1] : vector<8x8xf32> to vector<8xf32>
    %15 = vector.shape_cast %14 : vector<8xf32> to vector<8x1xf32>
    %16 = vector.broadcast %15 : vector<8x1xf32> to vector<8x8xf32>
    %17 = arith.subf %13, %16 : vector<8x8xf32>
    %18 = math.exp %17 : vector<8x8xf32>
    %cst_8 = arith.constant dense<0.000000e+00> : vector<8xf32>
    %19 = vector.multi_reduction <add>, %18, %cst_8 [1] : vector<8x8xf32> to vector<8xf32>
    %20 = vector.shape_cast %19 : vector<8xf32> to vector<8x1xf32>
    %21 = tpu.reciprocal %20 {approx = true} : vector<8x1xf32> -> vector<8x1xf32>
    %22 = vector.broadcast %21 : vector<8x1xf32> to vector<8x8xf32>
    %23 = arith.mulf %18, %22 : vector<8x8xf32>
    %24 = arith.truncf %23 : vector<8x8xf32> to vector<8x8xbf16>
    %25 = arith.truncf %10 : vector<8x128xf32> to vector<8x128xbf16>
    %cst_9 = arith.constant dense<0.000000e+00> : vector<8x128xf32>
    %26 = tpu.matmul %24, %25, %cst_9 {dimension_numbers = #tpu.dot_dimension_numbers<[1], [0], [0], [1], [0, 0, 1, 1], [], []>} : vector<8x8xbf16>, vector<8x128xbf16>, vector<8x128xf32> -> vector<8x128xf32>
    %27 = arith.truncf %26 : vector<8x128xf32> to vector<8x128xbf16>
    %c0_10 = arith.constant 0 : index
    %c0_11 = arith.constant 0 : index
    %28 = vector.load %arg4[%c0_10, %c0_11] : memref<128x128xbf16, #tpu.memory_space<vmem>>, vector<128x128xbf16>
    %cst_12 = arith.constant dense<0.000000e+00> : vector<8x128xf32>
    %29 = tpu.matmul %27, %28, %cst_12 {dimension_numbers = #tpu.dot_dimension_numbers<[1], [0], [0], [1], [0, 0, 1, 1], [], []>} : vector<8x128xbf16>, vector<128x128xbf16>, vector<8x128xf32> -> vector<8x128xf32>
    %c0_13 = arith.constant 0 : index
    %c0_14 = arith.constant 0 : index
    %30 = vector.load %arg5[%c0_13, %c0_14] : memref<1x128xf32, #tpu.memory_space<vmem>>, vector<1x128xf32>
    %31 = vector.broadcast %30 : vector<1x128xf32> to vector<8x128xf32>
    %32 = arith.addf %29, %31 : vector<8x128xf32>
    %33 = arith.addf %1, %32 : vector<8x128xf32>
    %c0_15 = arith.constant 0 : index
    %c0_16 = arith.constant 0 : index
    %34 = vector.load %arg10[%c0_15, %c0_16] : memref<4x128xf32, #tpu.memory_space<vmem>>, vector<1x128xf32>
    %c1 = arith.constant 1 : index
    %c0_17 = arith.constant 0 : index
    %35 = vector.load %arg10[%c1, %c0_17] : memref<4x128xf32, #tpu.memory_space<vmem>>, vector<1x128xf32>
    %cst_18 = arith.constant dense<0.000000e+00> : vector<8xf32>
    %36 = vector.multi_reduction <add>, %33, %cst_18 [1] : vector<8x128xf32> to vector<8xf32>
    %37 = vector.shape_cast %36 : vector<8xf32> to vector<8x1xf32>
    %cst_19 = arith.constant 3.125000e-02 : f32
    %38 = vector.broadcast %cst_19 : f32 to vector<8x1xf32>
    %39 = arith.mulf %37, %38 : vector<8x1xf32>
    %40 = arith.mulf %33, %33 : vector<8x128xf32>
    %cst_20 = arith.constant dense<0.000000e+00> : vector<8xf32>
    %41 = vector.multi_reduction <add>, %40, %cst_20 [1] : vector<8x128xf32> to vector<8xf32>
    %42 = vector.shape_cast %41 : vector<8xf32> to vector<8x1xf32>
    %cst_21 = arith.constant 3.125000e-02 : f32
    %43 = vector.broadcast %cst_21 : f32 to vector<8x1xf32>
    %44 = arith.mulf %42, %43 : vector<8x1xf32>
    %45 = arith.mulf %39, %39 : vector<8x1xf32>
    %46 = arith.subf %44, %45 : vector<8x1xf32>
    %47 = vector.broadcast %39 : vector<8x1xf32> to vector<8x128xf32>
    %48 = arith.subf %33, %47 : vector<8x128xf32>
    %cst_22 = arith.constant 9.99999974E-6 : f32
    %49 = vector.broadcast %cst_22 : f32 to vector<8x1xf32>
    %50 = arith.addf %46, %49 : vector<8x1xf32>
    %51 = math.rsqrt %50 : vector<8x1xf32>
    %52 = vector.broadcast %51 : vector<8x1xf32> to vector<8x128xf32>
    %53 = arith.mulf %48, %52 : vector<8x128xf32>
    %54 = vector.broadcast %34 : vector<1x128xf32> to vector<8x128xf32>
    %55 = arith.mulf %53, %54 : vector<8x128xf32>
    %56 = vector.broadcast %35 : vector<1x128xf32> to vector<8x128xf32>
    %57 = arith.addf %55, %56 : vector<8x128xf32>
    %58 = arith.truncf %57 : vector<8x128xf32> to vector<8x128xbf16>
    %c0_23 = arith.constant 0 : index
    %c0_24 = arith.constant 0 : index
    %59 = vector.load %arg6[%c0_23, %c0_24] : memref<128x128xbf16, #tpu.memory_space<vmem>>, vector<128x128xbf16>
    %cst_25 = arith.constant dense<0.000000e+00> : vector<8x128xf32>
    %60 = tpu.matmul %58, %59, %cst_25 {dimension_numbers = #tpu.dot_dimension_numbers<[1], [0], [0], [1], [0, 0, 1, 1], [], []>} : vector<8x128xbf16>, vector<128x128xbf16>, vector<8x128xf32> -> vector<8x128xf32>
    %c0_26 = arith.constant 0 : index
    %c0_27 = arith.constant 0 : index
    %61 = vector.load %arg7[%c0_26, %c0_27] : memref<1x128xf32, #tpu.memory_space<vmem>>, vector<1x128xf32>
    %62 = vector.broadcast %61 : vector<1x128xf32> to vector<8x128xf32>
    %63 = arith.addf %60, %62 : vector<8x128xf32>
    %cst_28 = arith.constant 0.000000e+00 : f32
    %64 = vector.broadcast %cst_28 : f32 to vector<8x128xf32>
    %65 = arith.maximumf %63, %64 : vector<8x128xf32>
    %66 = arith.truncf %65 : vector<8x128xf32> to vector<8x128xbf16>
    %c0_29 = arith.constant 0 : index
    %c0_30 = arith.constant 0 : index
    %67 = vector.load %arg8[%c0_29, %c0_30] : memref<128x128xbf16, #tpu.memory_space<vmem>>, vector<128x128xbf16>
    %cst_31 = arith.constant dense<0.000000e+00> : vector<8x128xf32>
    %68 = tpu.matmul %66, %67, %cst_31 {dimension_numbers = #tpu.dot_dimension_numbers<[1], [0], [0], [1], [0, 0, 1, 1], [], []>} : vector<8x128xbf16>, vector<128x128xbf16>, vector<8x128xf32> -> vector<8x128xf32>
    %c0_32 = arith.constant 0 : index
    %c0_33 = arith.constant 0 : index
    %69 = vector.load %arg9[%c0_32, %c0_33] : memref<1x128xf32, #tpu.memory_space<vmem>>, vector<1x128xf32>
    %70 = vector.broadcast %69 : vector<1x128xf32> to vector<8x128xf32>
    %71 = arith.addf %68, %70 : vector<8x128xf32>
    %72 = arith.addf %57, %71 : vector<8x128xf32>
    %c2 = arith.constant 2 : index
    %c0_34 = arith.constant 0 : index
    %73 = vector.load %arg10[%c2, %c0_34] : memref<4x128xf32, #tpu.memory_space<vmem>>, vector<1x128xf32>
    %c3 = arith.constant 3 : index
    %c0_35 = arith.constant 0 : index
    %74 = vector.load %arg10[%c3, %c0_35] : memref<4x128xf32, #tpu.memory_space<vmem>>, vector<1x128xf32>
    %cst_36 = arith.constant dense<0.000000e+00> : vector<8xf32>
    %75 = vector.multi_reduction <add>, %72, %cst_36 [1] : vector<8x128xf32> to vector<8xf32>
    %76 = vector.shape_cast %75 : vector<8xf32> to vector<8x1xf32>
    %cst_37 = arith.constant 3.125000e-02 : f32
    %77 = vector.broadcast %cst_37 : f32 to vector<8x1xf32>
    %78 = arith.mulf %76, %77 : vector<8x1xf32>
    %79 = arith.mulf %72, %72 : vector<8x128xf32>
    %cst_38 = arith.constant dense<0.000000e+00> : vector<8xf32>
    %80 = vector.multi_reduction <add>, %79, %cst_38 [1] : vector<8x128xf32> to vector<8xf32>
    %81 = vector.shape_cast %80 : vector<8xf32> to vector<8x1xf32>
    %cst_39 = arith.constant 3.125000e-02 : f32
    %82 = vector.broadcast %cst_39 : f32 to vector<8x1xf32>
    %83 = arith.mulf %81, %82 : vector<8x1xf32>
    %84 = arith.mulf %78, %78 : vector<8x1xf32>
    %85 = arith.subf %83, %84 : vector<8x1xf32>
    %86 = vector.broadcast %78 : vector<8x1xf32> to vector<8x128xf32>
    %87 = arith.subf %72, %86 : vector<8x128xf32>
    %cst_40 = arith.constant 9.99999974E-6 : f32
    %88 = vector.broadcast %cst_40 : f32 to vector<8x1xf32>
    %89 = arith.addf %85, %88 : vector<8x1xf32>
    %90 = math.rsqrt %89 : vector<8x1xf32>
    %91 = vector.broadcast %90 : vector<8x1xf32> to vector<8x128xf32>
    %92 = arith.mulf %87, %91 : vector<8x128xf32>
    %93 = vector.broadcast %73 : vector<1x128xf32> to vector<8x128xf32>
    %94 = arith.mulf %92, %93 : vector<8x128xf32>
    %95 = vector.broadcast %74 : vector<1x128xf32> to vector<8x128xf32>
    %96 = arith.addf %94, %95 : vector<8x128xf32>
    %c0_41 = arith.constant 0 : index
    %c0_42 = arith.constant 0 : index
    %c0_43 = arith.constant 0 : index
    %97 = vector.load %arg11[%c0_41, %c0_42, %c0_43] : memref<1x8x128xf32, #tpu.memory_space<vmem>>, vector<1x8x128xf32>
    %98 = vector.shape_cast %97 : vector<1x8x128xf32> to vector<8x128xf32>
    %99 = vector.shape_cast %96 : vector<8x128xf32> to vector<1x8x128xf32>
    tpu.vector_store %arg11[%c0_41, %c0_42, %c0_43], %99 {strides = array<i32>} : memref<1x8x128xf32, #tpu.memory_space<vmem>>, vector<1x8x128xf32>,
    return
  }
  func.func @transform_0(%arg0: i32) -> (i32, i32, i32) {
    %c0_i32 = arith.constant 0 : i32
    %c0_i32_0 = arith.constant 0 : i32
    %c0_i32_1 = arith.constant 0 : i32
    return %arg0, %c0_i32, %c0_i32_0 : i32, i32, i32
  }
  func.func @transform_1(%arg0: i32) -> (i32, i32) {
    %c0_i32 = arith.constant 0 : i32
    %c0_i32_0 = arith.constant 0 : i32
    %c0_i32_1 = arith.constant 0 : i32
    return %c0_i32, %c0_i32_0 : i32, i32
  }
  func.func @transform_2(%arg0: i32) -> (i32, i32) {
    %c0_i32 = arith.constant 0 : i32
    %c0_i32_0 = arith.constant 0 : i32
    %c0_i32_1 = arith.constant 0 : i32
    return %c0_i32, %c0_i32_0 : i32, i32
  }
  func.func @transform_3(%arg0: i32) -> (i32, i32) {
    %c0_i32 = arith.constant 0 : i32
    %c0_i32_0 = arith.constant 0 : i32
    %c0_i32_1 = arith.constant 0 : i32
    return %c0_i32, %c0_i32_0 : i32, i32
  }
  func.func @transform_4(%arg0: i32) -> (i32, i32) {
    %c0_i32 = arith.constant 0 : i32
    %c0_i32_0 = arith.constant 0 : i32
    %c0_i32_1 = arith.constant 0 : i32
    return %c0_i32, %c0_i32_0 : i32, i32
  }
  func.func @transform_5(%arg0: i32) -> (i32, i32) {
    %c0_i32 = arith.constant 0 : i32
    %c0_i32_0 = arith.constant 0 : i32
    %c0_i32_1 = arith.constant 0 : i32
    return %c0_i32, %c0_i32_0 : i32, i32
  }
  func.func @transform_6(%arg0: i32) -> (i32, i32) {
    %c0_i32 = arith.constant 0 : i32
    %c0_i32_0 = arith.constant 0 : i32
    %c0_i32_1 = arith.constant 0 : i32
    return %c0_i32, %c0_i32_0 : i32, i32
  }
  func.func @transform_7(%arg0: i32) -> (i32, i32) {
    %c0_i32 = arith.constant 0 : i32
    %c0_i32_0 = arith.constant 0 : i32
    %c0_i32_1 = arith.constant 0 : i32
    return %c0_i32, %c0_i32_0 : i32, i32
  }
  func.func @transform_8(%arg0: i32) -> (i32, i32) {
    %c0_i32 = arith.constant 0 : i32
    %c0_i32_0 = arith.constant 0 : i32
    %c0_i32_1 = arith.constant 0 : i32
    return %c0_i32, %c0_i32_0 : i32, i32
  }
  func.func @transform_9(%arg0: i32) -> (i32, i32) {
    %c0_i32 = arith.constant 0 : i32
    %c0_i32_0 = arith.constant 0 : i32
    %c0_i32_1 = arith.constant 0 : i32
    return %c0_i32, %c0_i32_0 : i32, i32
  }
  func.func @transform_10(%arg0: i32) -> (i32, i32, i32) {
    %c0_i32 = arith.constant 0 : i32
    %c0_i32_0 = arith.constant 0 : i32
    %c0_i32_1 = arith.constant 0 : i32
    return %arg0, %c0_i32, %c0_i32_0 : i32, i32, i32
  }
}

</mosaic_0001>

<llo_original>
// kernel: tpu_custom_call.1
$region0: #{tpu_custom_call.1}
  #allocation0 [shape = 'u32[]', space=smem, size = 0x4, offset = 0x4, fixed_abs, tag = 'smem constant byte address 0x4 - core index']
  #allocation1 [shape = 'u32[144,128]{1,0:T(1,128)}', space=vmem, size = 0x12000, scoped, tag = 'internal scratch']
  %s0 = inlined_call_operand.hbm [shape: f32[2,8,128], index: 0, kind: input, shape index: {}]
  %s1 = inlined_call_operand.hbm [shape: bf16[128,384], index: 1, kind: input, shape index: {}]
  %s2 = inlined_call_operand.vmem [shape: f32[1,384], index: 2, kind: input, shape index: {}]
  %s3 = inlined_call_operand.hbm [shape: bf16[128,128], index: 3, kind: input, shape index: {}]
  %s4 = inlined_call_operand.vmem [shape: f32[1,128], index: 4, kind: input, shape index: {}]
  %s5 = inlined_call_operand.hbm [shape: bf16[128,128], index: 5, kind: input, shape index: {}]
  %s6 = inlined_call_operand.vmem [shape: f32[1,128], index: 6, kind: input, shape index: {}]
  %s7 = inlined_call_operand.hbm [shape: bf16[128,128], index: 7, kind: input, shape index: {}]
  %s8 = inlined_call_operand.vmem [shape: f32[1,128], index: 8, kind: input, shape index: {}]
  %s9 = inlined_call_operand.vmem [shape: f32[4,128], index: 9, kind: input, shape index: {}]
  %s10 = inlined_call_operand.hbm [shape: f32[2,8,128], index: 10, kind: output, shape index: {}]
  %s11 = sld [smem:[#allocation0]]
  $region93: #{tpu_custom_call.1} parent=0
    _
  %s13 = ssub.s32 1, %s11
  %s14 = scalar_select 0, %s13, %s11
  $region1: #{tpu_custom_call.1} parent=0
    #allocation2 [shape = 'u8[8192]{0}', space=vmem, size = 0x2000, scoped, tag = 'input window, operand 0']
    #allocation3 [shape = 's32[2]{0}', space=sflag, size = 0x8, scoped, tag = 'scoped memory for tpu_custom_call.1']
    #allocation4 [shape = 's32[2]{0}', space=sflag, size = 0x8, scoped, tag = 'scoped memory for tpu_custom_call.1']
    #allocation5 [shape = 'u8[98304]{0}', space=vmem, size = 0x18000, scoped, tag = 'input window, operand 1, single buffered']
    #allocation6 [shape = 's32[1]{0}', space=sflag, size = 0x4, scoped, tag = 'scoped memory for tpu_custom_call.1']
    #allocation7 [shape = 'u8[32768]{0}', space=vmem, size = 0x8000, scoped, tag = 'input window, operand 3, single buffered']
    #allocation8 [shape = 'u8[32768]{0}', space=vmem, size = 0x8000, scoped, tag = 'input window, operand 5, single buffered']
    #allocation9 [shape = 's32[1]{0}', space=sflag, size = 0x4, scoped, tag = 'scoped memory for tpu_custom_call.1']
    #allocation10 [shape = 'u8[32768]{0}', space=vmem, size = 0x8000, scoped, tag = 'input window, operand 7, single buffered']
    #allocation11 [shape = 'u8[8192]{0}', space=vmem, size = 0x2000, scoped, tag = 'output window, operand 0']
    %15 = vsyncpa [#allocation3], 0
    %s16 = scalar_lea.sflag [#allocation3], 1
    %17 = vsyncpa %s16, 0
    %18 = vsyncpa [#allocation6], 0
    %19 = vsyncpa [#allocation9], 0
    %20 = vsyncpa [#allocation4], 0
    %s21 = scalar_lea.sflag [#allocation4], 1
    %22 = vsyncpa %s21, 0
    loop: start=0, step=1, limit=4
    $region2: #{tpu_custom_call.1} parent=1 // loop_pre_header
      _
    $region3: #{tpu_custom_call.1} parent=1 // loop_header
      %s24 = sphi 0, %s28
      %p25 = scmp.ge.s32.totalorder %s24, 4
      %s34 = sphi 0, %s36
      %s37 = sphi 0, %s34
      %s38 = sphi 0, %s37
      %s54 = sphi 0, %s38
      %s58 = sphi 0, %s58
      %s60 = sphi 0, %s58
      %s61 = sphi 0, %s60
      %s75 = sphi 0, %s61
      %s79 = sphi 0, %s79
      %s81 = sphi 0, %s79
      %s82 = sphi 0, %s81
      %s96 = sphi 0, %s82
      %s100 = sphi 0, %s100
      %s102 = sphi 0, %s100
      %s103 = sphi 0, %s102
      %s117 = sphi 0, %s103
      %s121 = sphi 0, %s121
      %s123 = sphi 0, %s121
      %s124 = sphi 0, %s123
      %s138 = sphi 0, %s124
      %s142 = sphi 0, %s142
      %s144 = sphi 0, %s142
      %s145 = sphi 0, %s144
      %s159 = sphi 0, %s145
      %s163 = sphi 0, %s163
      %s165 = sphi 0, %s163
      %s166 = sphi 0, %s165
      %s180 = sphi 0, %s166
      %s184 = sphi 0, %s184
      %s186 = sphi 0, %s184
      %s187 = sphi 0, %s186
      %s201 = sphi 0, %s187
      %s205 = sphi 0, %s205
      %s207 = sphi 0, %s205
      %s208 = sphi 0, %s207
      %s222 = sphi 0, %s208
      %s226 = sphi 0, %s226
      %s228 = sphi 0, %s226
      %s229 = sphi 0, %s228
      %s243 = sphi 0, %s229
      %s249 = sphi 0, %s251
      %s252 = sphi 0, %s249
      %s253 = sphi 0, %s252
      %s269 = sphi 0, %s253
    $region4: #{tpu_custom_call.1} parent=1 // loop_header_branch
      %27 = sbr.rel (%p25) target = $region8
    $region5: #{tpu_custom_call.1} parent=1 // loop_body
      %s29 = ssub.s32 %s24, 1
      %s30 = ssub.s32 %s24, 2
      %s31 = sadd.s32 %s24, 1
      %s32 = ssub.s32 %s24, %s31
      %p33 = scmp.eq.s32.totalorder %s32, 0
      %s35 = sadd.s32 %s34, 1
      %s36 = scalar_select %p33, %s34, %s35
      %p39 = pneg %p33
      %p40 = scmp.eq.s32.totalorder %s24, 1
      %p41 = por %p39, %p40
      %p42 = scmp.ne.s32.totalorder %s34, %s37
      %p43 = scmp.eq.s32.totalorder %s24, 0
      %p44 = por %p42, %p43
      %p45 = scmp.ne.s32.totalorder %s34, %s37
      %p46 = scmp.eq.s32.totalorder %s29, 1
      %p47 = por %p45, %p46
      %p48 = scmp.ne.s32.totalorder %s37, %s38
      %p49 = scmp.eq.s32.totalorder %s29, 0
      %p50 = por %p48, %p49
      %p51 = scmp.ne.s32.totalorder %s37, %s38
      %p52 = scmp.eq.s32.totalorder %s30, 1
      %p53 = por %p51, %p52
      %p55 = scmp.ne.s32.totalorder %s38, %s54
      %p56 = scmp.eq.s32.totalorder %s30, 0
      %p57 = por %p55, %p56
      %s59 = sadd.s32 %s58, 1
      %p62 = scmp.eq.s32.totalorder %s24, 1
      %p63 = scmp.ne.s32.totalorder %s58, %s60
      %p64 = scmp.eq.s32.totalorder %s24, 0
      %p65 = por %p63, %p64
      %p66 = scmp.ne.s32.totalorder %s58, %s60
      %p67 = scmp.eq.s32.totalorder %s29, 1
      %p68 = por %p66, %p67
      %p69 = scmp.ne.s32.totalorder %s60, %s61
      %p70 = scmp.eq.s32.totalorder %s29, 0
      %p71 = por %p69, %p70
      %p72 = scmp.ne.s32.totalorder %s60, %s61
      %p73 = scmp.eq.s32.totalorder %s30, 1
      %p74 = por %p72, %p73
      %p76 = scmp.ne.s32.totalorder %s61, %s75
      %p77 = scmp.eq.s32.totalorder %s30, 0
      %p78 = por %p76, %p77
      %s80 = sadd.s32 %s79, 1
      %p83 = scmp.eq.s32.totalorder %s24, 1
      %p84 = scmp.ne.s32.totalorder %s79, %s81
      %p85 = scmp.eq.s32.totalorder %s24, 0
      %p86 = por %p84, %p85
      %p87 = scmp.ne.s32.totalorder %s79, %s81
      %p88 = scmp.eq.s32.totalorder %s29, 1
      %p89 = por %p87, %p88
      %p90 = scmp.ne.s32.totalorder %s81, %s82
      %p91 = scmp.eq.s32.totalorder %s29, 0
      %p92 = por %p90, %p91
      %p93 = scmp.ne.s32.totalorder %s81, %s82
      %p94 = scmp.eq.s32.totalorder %s30, 1
      %p95 = por %p93, %p94
      %p97 = scmp.ne.s32.totalorder %s82, %s96
      %p98 = scmp.eq.s32.totalorder %s30, 0
      %p99 = por %p97, %p98
      %s101 = sadd.s32 %s100, 1
      %p104 = scmp.eq.s32.totalorder %s24, 1
      %p105 = scmp.ne.s32.totalorder %s100, %s102
      %p106 = scmp.eq.s32.totalorder %s24, 0
      %p107 = por %p105, %p106
      %p108 = scmp.ne.s32.totalorder %s100, %s102
      %p109 = scmp.eq.s32.totalorder %s29, 1
      %p110 = por %p108, %p109
      %p111 = scmp.ne.s32.totalorder %s102, %s103
      %p112 = scmp.eq.s32.totalorder %s29, 0
      %p113 = por %p111, %p112
      %p114 = scmp.ne.s32.totalorder %s102, %s103
      %p115 = scmp.eq.s32.totalorder %s30, 1
      %p116 = por %p114, %p115
      %p118 = scmp.ne.s32.totalorder %s103, %s117
      %p119 = scmp.eq.s32.totalorder %s30, 0
      %p120 = por %p118, %p119
      %s122 = sadd.s32 %s121, 1
      %p125 = scmp.eq.s32.totalorder %s24, 1
      %p126 = scmp.ne.s32.totalorder %s121, %s123
      %p127 = scmp.eq.s32.totalorder %s24, 0
      %p128 = por %p126, %p127
      %p129 = scmp.ne.s32.totalorder %s121, %s123
      %p130 = scmp.eq.s32.totalorder %s29, 1
      %p131 = por %p129, %p130
      %p132 = scmp.ne.s32.totalorder %s123, %s124
      %p133 = scmp.eq.s32.totalorder %s29, 0
      %p134 = por %p132, %p133
      %p135 = scmp.ne.s32.totalorder %s123, %s124
      %p136 = scmp.eq.s32.totalorder %s30, 1
      %p137 = por %p135, %p136
      %p139 = scmp.ne.s32.totalorder %s124, %s138
      %p140 = scmp.eq.s32.totalorder %s30, 0
      %p141 = por %p139, %p140
      %s143 = sadd.s32 %s142, 1
      %p146 = scmp.eq.s32.totalorder %s24, 1
      %p147 = scmp.ne.s32.totalorder %s142, %s144
      %p148 = scmp.eq.s32.totalorder %s24, 0
      %p149 = por %p147, %p148
      %p150 = scmp.ne.s32.totalorder %s142, %s144
      %p151 = scmp.eq.s32.totalorder %s29, 1
      %p152 = por %p150, %p151
      %p153 = scmp.ne.s32.totalorder %s144, %s145
      %p154 = scmp.eq.s32.totalorder %s29, 0
      %p155 = por %p153, %p154
      %p156 = scmp.ne.s32.totalorder %s144, %s145
      %p157 = scmp.eq.s32.totalorder %s30, 1
      %p158 = por %p156, %p157
      %p160 = scmp.ne.s32.totalorder %s145, %s159
      %p161 = scmp.eq.s32.totalorder %s30, 0
      %p162 = por %p160, %p161
      %s164 = sadd.s32 %s163, 1
      %p167 = scmp.eq.s32.totalorder %s24, 1
      %p168 = scmp.ne.s32.totalorder %s163, %s165
      %p169 = scmp.eq.s32.totalorder %s24, 0
      %p170 = por %p168, %p169
      %p171 = scmp.ne.s32.totalorder %s163, %s165
      %p172 = scmp.eq.s32.totalorder %s29, 1
      %p173 = por %p171, %p172
      %p174 = scmp.ne.s32.totalorder %s165, %s166
      %p175 = scmp.eq.s32.totalorder %s29, 0
      %p176 = por %p174, %p175
      %p177 = scmp.ne.s32.totalorder %s165, %s166
      %p178 = scmp.eq.s32.totalorder %s30, 1
      %p179 = por %p177, %p178
      %p181 = scmp.ne.s32.totalorder %s166, %s180
      %p182 = scmp.eq.s32.totalorder %s30, 0
      %p183 = por %p181, %p182
      %s185 = sadd.s32 %s184, 1
      %p188 = scmp.eq.s32.totalorder %s24, 1
      %p189 = scmp.ne.s32.totalorder %s184, %s186
      %p190 = scmp.eq.s32.totalorder %s24, 0
      %p191 = por %p189, %p190
      %p192 = scmp.ne.s32.totalorder %s184, %s186
      %p193 = scmp.eq.s32.totalorder %s29, 1
      %p194 = por %p192, %p193
      %p195 = scmp.ne.s32.totalorder %s186, %s187
      %p196 = scmp.eq.s32.totalorder %s29, 0
      %p197 = por %p195, %p196
      %p198 = scmp.ne.s32.totalorder %s186, %s187
      %p199 = scmp.eq.s32.totalorder %s30, 1
      %p200 = por %p198, %p199
      %p202 = scmp.ne.s32.totalorder %s187, %s201
      %p203 = scmp.eq.s32.totalorder %s30, 0
      %p204 = por %p202, %p203
      %s206 = sadd.s32 %s205, 1
      %p209 = scmp.eq.s32.totalorder %s24, 1
      %p210 = scmp.ne.s32.totalorder %s205, %s207
      %p211 = scmp.eq.s32.totalorder %s24, 0
      %p212 = por %p210, %p211
      %p213 = scmp.ne.s32.totalorder %s205, %s207
      %p214 = scmp.eq.s32.totalorder %s29, 1
      %p215 = por %p213, %p214
      %p216 = scmp.ne.s32.totalorder %s207, %s208
      %p217 = scmp.eq.s32.totalorder %s29, 0
      %p218 = por %p216, %p217
      %p219 = scmp.ne.s32.totalorder %s207, %s208
      %p220 = scmp.eq.s32.totalorder %s30, 1
      %p221 = por %p219, %p220
      %p223 = scmp.ne.s32.totalorder %s208, %s222
      %p224 = scmp.eq.s32.totalorder %s30, 0
      %p225 = por %p223, %p224
      %s227 = sadd.s32 %s226, 1
      %p230 = scmp.eq.s32.totalorder %s24, 1
      %p231 = scmp.ne.s32.totalorder %s226, %s228
      %p232 = scmp.eq.s32.totalorder %s24, 0
      %p233 = por %p231, %p232
      %p234 = scmp.ne.s32.totalorder %s226, %s228
      %p235 = scmp.eq.s32.totalorder %s29, 1
      %p236 = por %p234, %p235
      %p237 = scmp.ne.s32.totalorder %s228, %s229
      %p238 = scmp.eq.s32.totalorder %s29, 0
      %p239 = por %p237, %p238
      %p240 = scmp.ne.s32.totalorder %s228, %s229
      %p241 = scmp.eq.s32.totalorder %s30, 1
      %p242 = por %p240, %p241
      %p244 = scmp.ne.s32.totalorder %s229, %s243
      %p245 = scmp.eq.s32.totalorder %s30, 0
      %p246 = por %p244, %p245
      %s247 = ssub.s32 %s24, %s31
      %p248 = scmp.eq.s32.totalorder %s247, 0
      %s250 = sadd.s32 %s249, 1
      %s251 = scalar_select %p248, %s249, %s250
      %p254 = pneg %p248
      %p255 = scmp.eq.s32.totalorder %s24, 1
      %p256 = por %p254, %p255
      %p257 = scmp.ne.s32.totalorder %s249, %s252
      %p258 = scmp.eq.s32.totalorder %s24, 0
      %p259 = por %p257, %p258
      %p260 = scmp.ne.s32.totalorder %s249, %s252
      %p261 = scmp.eq.s32.totalorder %s29, 1
      %p262 = por %p260, %p261
      %p263 = scmp.ne.s32.totalorder %s252, %s253
      %p264 = scmp.eq.s32.totalorder %s29, 0
      %p265 = por %p263, %p264
      %p266 = scmp.ne.s32.totalorder %s252, %s253
      %p267 = scmp.eq.s32.totalorder %s30, 1
      %p268 = por %p266, %p267
      %p270 = scmp.ne.s32.totalorder %s253, %s269
      %p271 = scmp.eq.s32.totalorder %s30, 0
      %p272 = por %p270, %p271
      %p273 = scmp.le.s32.totalorder 1, %s24
      %p274 = scmp.lt.s32.totalorder %s24, 3
      %p275 = pnand %p273, %p274
      %p276 = pneg %p275
      // Predicated region
      $region9: #{tpu_custom_call.1} parent=5 // pred_check
        _
      $region10: #{tpu_custom_call.1} parent=5 // pred_check_branch
        %278 = sbr.rel (%p275) target = $region12
      $region11: #{tpu_custom_call.1} parent=5 // pred_region
        %s279 = ssub.s32 %s24, 1
        // Predicated region
        $region13: #{tpu_custom_call.1} parent=11 // pred_check
          %p280 = pneg %p71
        $region14: #{tpu_custom_call.1} parent=11 // pred_check_branch
          %282 = sbr.rel (%p280) target = $region16
        $region15: #{tpu_custom_call.1} parent=11 // pred_region
          %s284 = ssub.s32 3072, 3072
          %285 = vsyncadd [#allocation6], %s284
          %s286 = sshll.u32 [#allocation5], 4
          %s287 = int_to_ptr.vmem [resolvable:$true] %s286
          %292 = dma.hbm_to_vmem [thread:$0]  %s1, 3072, %s287, [#allocation6], 192, 192, 12
        $region16: #{tpu_custom_call.1} parent=11 // pred_fallthru
          _
        // Predicated region
        $region17: #{tpu_custom_call.1} parent=11 // pred_check
          %p293 = pneg %p92
        $region18: #{tpu_custom_call.1} parent=11 // pred_check_branch
          %295 = sbr.rel (%p293) target = $region20
        $region19: #{tpu_custom_call.1} parent=11 // pred_region
          _
        $region20: #{tpu_custom_call.1} parent=11 // pred_fallthru
          _
        // Predicated region
        $region21: #{tpu_custom_call.1} parent=11 // pred_check
          %p296 = pneg %p113
        $region22: #{tpu_custom_call.1} parent=11 // pred_check_branch
          %298 = sbr.rel (%p296) target = $region24
        $region23: #{tpu_custom_call.1} parent=11 // pred_region
          %s300 = ssub.s32 1024, 1024
          %301 = vsyncadd [#allocation6], %s300
          %s302 = sshll.u32 [#allocation7], 4
          %s303 = int_to_ptr.vmem [resolvable:$true] %s302
          %308 = dma.hbm_to_vmem [thread:$0]  %s3, 1024, %s303, [#allocation6], 64, 64, 4
        $region24: #{tpu_custom_call.1} parent=11 // pred_fallthru
          _
        // Predicated region
        $region25: #{tpu_custom_call.1} parent=11 // pred_check
          %p309 = pneg %p134
        $region26: #{tpu_custom_call.1} parent=11 // pred_check_branch
          %311 = sbr.rel (%p309) target = $region28
        $region27: #{tpu_custom_call.1} parent=11 // pred_region
          _
        $region28: #{tpu_custom_call.1} parent=11 // pred_fallthru
          _
        // Predicated region
        $region29: #{tpu_custom_call.1} parent=11 // pred_check
          %p312 = pneg %p155
        $region30: #{tpu_custom_call.1} parent=11 // pred_check_branch
          %314 = sbr.rel (%p312) target = $region32
        $region31: #{tpu_custom_call.1} parent=11 // pred_region
          %s316 = ssub.s32 1024, 1024
          %317 = vsyncadd [#allocation9], %s316
          %s318 = sshll.u32 [#allocation8], 4
          %s319 = int_to_ptr.vmem [resolvable:$true] %s318
          %324 = dma.hbm_to_vmem [thread:$0]  %s5, 1024, %s319, [#allocation9], 64, 64, 4
        $region32: #{tpu_custom_call.1} parent=11 // pred_fallthru
          _
        // Predicated region
        $region33: #{tpu_custom_call.1} parent=11 // pred_check
          %p325 = pneg %p176
        $region34: #{tpu_custom_call.1} parent=11 // pred_check_branch
          %327 = sbr.rel (%p325) target = $region36
        $region35: #{tpu_custom_call.1} parent=11 // pred_region
          _
        $region36: #{tpu_custom_call.1} parent=11 // pred_fallthru
          _
        // Predicated region
        $region37: #{tpu_custom_call.1} parent=11 // pred_check
          %p328 = pneg %p197
        $region38: #{tpu_custom_call.1} parent=11 // pred_check_branch
          %330 = sbr.rel (%p328) target = $region40
        $region39: #{tpu_custom_call.1} parent=11 // pred_region
          %s332 = ssub.s32 1024, 1024
          %333 = vsyncadd [#allocation9], %s332
          %s334 = sshll.u32 [#allocation10], 4
          %s335 = int_to_ptr.vmem [resolvable:$true] %s334
          %340 = dma.hbm_to_vmem [thread:$0]  %s7, 1024, %s335, [#allocation9], 64, 64, 4
        $region40: #{tpu_custom_call.1} parent=11 // pred_fallthru
          _
        // Predicated region
        $region41: #{tpu_custom_call.1} parent=11 // pred_check
          %p341 = pneg %p218
        $region42: #{tpu_custom_call.1} parent=11 // pred_check_branch
          %343 = sbr.rel (%p341) target = $region44
        $region43: #{tpu_custom_call.1} parent=11 // pred_region
          _
        $region44: #{tpu_custom_call.1} parent=11 // pred_fallthru
          _
        // Predicated region
        $region45: #{tpu_custom_call.1} parent=11 // pred_check
          %p344 = pneg %p239
        $region46: #{tpu_custom_call.1} parent=11 // pred_check_branch
          %346 = sbr.rel (%p344) target = $region48
        $region47: #{tpu_custom_call.1} parent=11 // pred_region
          _
        $region48: #{tpu_custom_call.1} parent=11 // pred_fallthru
          _
      $region12: #{tpu_custom_call.1} parent=5 // pred_fallthru
        _
      %p347 = scmp.lt.s32.totalorder %s24, 2
      // Predicated region
      $region49: #{tpu_custom_call.1} parent=5 // pred_check
        %p348 = pneg %p347
      $region50: #{tpu_custom_call.1} parent=5 // pred_check_branch
        %350 = sbr.rel (%p348) target = $region52
      $region51: #{tpu_custom_call.1} parent=5 // pred_region
        // Predicated region
        $region53: #{tpu_custom_call.1} parent=51 // pred_check
          %p351 = pneg %p44
        $region54: #{tpu_custom_call.1} parent=51 // pred_check_branch
          %353 = sbr.rel (%p351) target = $region56
        $region55: #{tpu_custom_call.1} parent=51 // pred_region
          %s354 = sand.u32 %s34, 1
          %s355 = scalar_lea.sflag [#allocation3], %s354
          %s356 = sand.u32 %s34, 1
          %s357 = smul.addr %s356, 8
          %s358 = scalar_lea.vmem [#allocation2], %s357
          %s360 = ssub.s32 128, 128
          %361 = vsyncadd %s355, %s360
          %s362 = smul.addr %s24, 128
          %s363 = scalar_lea.hbm %s0, %s362
          %s365 = sshll.u32 %s358, 4
          %s366 = int_to_ptr.vmem [resolvable:$true] %s365
          %368 = dma.hbm_to_vmem [thread:$0]  %s363, 128, %s366, %s355
        $region56: #{tpu_custom_call.1} parent=51 // pred_fallthru
          _
      $region52: #{tpu_custom_call.1} parent=5 // pred_fallthru
        _
      %p369 = scmp.le.s32.totalorder 1, %s24
      %p370 = scmp.lt.s32.totalorder %s24, 3
      %p371 = pnand %p369, %p370
      %p372 = pneg %p371
      // Predicated region
      $region57: #{tpu_custom_call.1} parent=5 // pred_check
        _
      $region58: #{tpu_custom_call.1} parent=5 // pred_check_branch
        %374 = sbr.rel (%p371) target = $region60
      $region59: #{tpu_custom_call.1} parent=5 // pred_region
        %s375 = ssub.s32 %s24, 1
        %s376 = sand.u32 %s37, 1
        %s377 = scalar_lea.sflag [#allocation3], %s376
        %s378 = sand.u32 %s37, 1
        %s379 = smul.addr %s378, 8
        %s380 = scalar_lea.vmem [#allocation2], %s379
        // Predicated region
        $region61: #{tpu_custom_call.1} parent=59 // pred_check
          %p381 = pneg %p50
        $region62: #{tpu_custom_call.1} parent=59 // pred_check_branch
          %383 = sbr.rel (%p381) target = $region64
        $region63: #{tpu_custom_call.1} parent=59 // pred_region
          %384 = dma.done %s377, 128
        $region64: #{tpu_custom_call.1} parent=59 // pred_fallthru
          _
        // Predicated region
        $region65: #{tpu_custom_call.1} parent=59 // pred_check
          %p385 = pneg %p71
        $region66: #{tpu_custom_call.1} parent=59 // pred_check_branch
          %387 = sbr.rel (%p385) target = $region68
        $region67: #{tpu_custom_call.1} parent=59 // pred_region
          %388 = dma.done [#allocation6], 3072
        $region68: #{tpu_custom_call.1} parent=59 // pred_fallthru
          _
        // Predicated region
        $region69: #{tpu_custom_call.1} parent=59 // pred_check
          %p389 = pneg %p113
        $region70: #{tpu_custom_call.1} parent=59 // pred_check_branch
          %391 = sbr.rel (%p389) target = $region72
        $region71: #{tpu_custom_call.1} parent=59 // pred_region
          %392 = dma.done [#allocation6], 1024
        $region72: #{tpu_custom_call.1} parent=59 // pred_fallthru
          _
        // Predicated region
        $region73: #{tpu_custom_call.1} parent=59 // pred_check
          %p393 = pneg %p155
        $region74: #{tpu_custom_call.1} parent=59 // pred_check_branch
          %395 = sbr.rel (%p393) target = $region76
        $region75: #{tpu_custom_call.1} parent=59 // pred_region
          %396 = dma.done [#allocation9], 1024
        $region76: #{tpu_custom_call.1} parent=59 // pred_fallthru
          _
        // Predicated region
        $region77: #{tpu_custom_call.1} parent=59 // pred_check
          %p397 = pneg %p197
        $region78: #{tpu_custom_call.1} parent=59 // pred_check_branch
          %399 = sbr.rel (%p397) target = $region80
        $region79: #{tpu_custom_call.1} parent=59 // pred_region
          %400 = dma.done [#allocation9], 1024
        $region80: #{tpu_custom_call.1} parent=59 // pred_fallthru
          _
        %s401 = sand.u32 %s37, 1
        %s402 = scalar_lea.sflag [#allocation3], %s401
        %s403 = sand.u32 %s37, 1
        %s404 = smul.addr %s403, 8
        %s405 = scalar_lea.vmem [#allocation2], %s404
        %p406 = pneg %p50
        %p407 = pneg %p47
        %p408 = pneg %p71
        %p409 = pneg %p68
        %p410 = pneg %p92
        %p411 = pneg %p89
        %p412 = pneg %p113
        %p413 = pneg %p110
        %p414 = pneg %p134
        %p415 = pneg %p131
        %p416 = pneg %p155
        %p417 = pneg %p152
        %p418 = pneg %p176
        %p419 = pneg %p173
        %p420 = pneg %p197
        %p421 = pneg %p194
        %p422 = pneg %p218
        %p423 = pneg %p215
        %p424 = pneg %p239
        %p425 = pneg %p236
        %p426 = pneg %p265
        %p427 = pneg %p262
        %s428 = sand.u32 %s252, 1
        %s429 = scalar_lea.sflag [#allocation4], %s428
        %s430 = sand.u32 %s252, 1
        %s431 = smul.addr %s430, 8
        %s432 = scalar_lea.vmem [#allocation11], %s431
        %v434 = vld [vmem:[%s380] sm:$0xff]
        %v435 = vpack.c.bf16 %v434, %v434
        %v436 = vld [vmem:[#allocation5] sm:$0xff]
        %v437 = vld [vmem:[#allocation5 + $0x8] sm:$0xf]
        %v438 = vld [vmem:[#allocation5 + $0xc] sm:$0xff]
        %v439 = vld [vmem:[#allocation5 + $0x14] sm:$0xf]
        %v440 = vld [vmem:[#allocation5 + $0x18] sm:$0xff]
        %v441 = vld [vmem:[#allocation5 + $0x20] sm:$0xf]
        %v442 = vld [vmem:[#allocation5 + $0x24] sm:$0xff]
        %v443 = vld [vmem:[#allocation5 + $0x2c] sm:$0xf]
        %v444 = vld [vmem:[#allocation5 + $0x30] sm:$0xff]
        %v445 = vld [vmem:[#allocation5 + $0x38] sm:$0xf]
        %v446 = vld [vmem:[#allocation5 + $0x3c] sm:$0xff]
        %v447 = vld [vmem:[#allocation5 + $0x44] sm:$0xf]
        %v448 = vld [vmem:[#allocation5 + $0x48] sm:$0xff]
        %v449 = vld [vmem:[#allocation5 + $0x50] sm:$0xf]
        %v450 = vld [vmem:[#allocation5 + $0x54] sm:$0xff]
        %v451 = vld [vmem:[#allocation5 + $0x5c] sm:$0xf]
        %v452 = vld [vmem:[#allocation5 + $0x60] sm:$0xff]
        %v453 = vld [vmem:[#allocation5 + $0x68] sm:$0xf]
        %v454 = vld [vmem:[#allocation5 + $0x6c] sm:$0xff]
        %v455 = vld [vmem:[#allocation5 + $0x74] sm:$0xf]
        %v456 = vld [vmem:[#allocation5 + $0x78] sm:$0xff]
        %v457 = vld [vmem:[#allocation5 + $0x80] sm:$0xf]
        %v458 = vld [vmem:[#allocation5 + $0x84] sm:$0xff]
        %v459 = vld [vmem:[#allocation5 + $0x8c] sm:$0xf]
        %v460 = vld [vmem:[#allocation5 + $0x90] sm:$0xff]
        %v461 = vld [vmem:[#allocation5 + $0x98] sm:$0xf]
        %v462 = vld [vmem:[#allocation5 + $0x9c] sm:$0xff]
        %v463 = vld [vmem:[#allocation5 + $0xa4] sm:$0xf]
        %v464 = vld [vmem:[#allocation5 + $0xa8] sm:$0xff]
        %v465 = vld [vmem:[#allocation5 + $0xb0] sm:$0xf]
        %v466 = vld [vmem:[#allocation5 + $0xb4] sm:$0xff]
        %v467 = vld [vmem:[#allocation5 + $0xbc] sm:$0xf]
        %v468 = vld [vmem:[%s2] sm:$0x7]
        %v470 = vlaneseq
        %v471 = vshrl.u32 %v470, 7
        %v472 = vsub.s32 0, %v471
        %v473 = vrot.slane %v468, %v472
        %v474 = vlaneseq
        %v475 = vshrl.u32 %v474, 7
        %v476 = vsub.s32 1, %v475
        %v477 = vrot.slane %v468, %v476
        %v478 = vlaneseq
        %v479 = vshrl.u32 %v478, 7
        %v480 = vsub.s32 2, %v479
        %v481 = vrot.slane %v468, %v480
        %v517 = vunpack.c.l.b16 %v436
        %v518 = vunpack.c.h.b16 %v436
        %v519 = vunpack.c.l.b16 %v437
        %v520 = vunpack.c.l.b16 %v438
        %v521 = vunpack.c.h.b16 %v438
        %v522 = vunpack.c.l.b16 %v439
        %v523 = vunpack.c.l.b16 %v440
        %v524 = vunpack.c.h.b16 %v440
        %v525 = vunpack.c.l.b16 %v441
        %v526 = vunpack.c.l.b16 %v442
        %v527 = vunpack.c.h.b16 %v442
        %v528 = vunpack.c.l.b16 %v443
        %v529 = vunpack.c.l.b16 %v444
        %v530 = vunpack.c.h.b16 %v444
        %v531 = vunpack.c.l.b16 %v445
        %v532 = vunpack.c.l.b16 %v446
        %v533 = vunpack.c.h.b16 %v446
        %v534 = vunpack.c.l.b16 %v447
        %v535 = vunpack.c.l.b16 %v448
        %v536 = vunpack.c.h.b16 %v448
        %v537 = vunpack.c.l.b16 %v449
        %v538 = vunpack.c.l.b16 %v450
        %v539 = vunpack.c.h.b16 %v450
        %v540 = vunpack.c.l.b16 %v451
        %v541 = vunpack.c.l.b16 %v452
        %v542 = vunpack.c.h.b16 %v452
        %v543 = vunpack.c.l.b16 %v453
        %v544 = vunpack.c.l.b16 %v454
        %v545 = vunpack.c.h.b16 %v454
        %v546 = vunpack.c.l.b16 %v455
        %v547 = vunpack.c.l.b16 %v456
        %v548 = vunpack.c.h.b16 %v456
        %v549 = vunpack.c.l.b16 %v457
        %v550 = vunpack.c.l.b16 %v458
        %v551 = vunpack.c.h.b16 %v458
        %v552 = vunpack.c.l.b16 %v459
        %v553 = vunpack.c.l.b16 %v460
        %v554 = vunpack.c.h.b16 %v460
        %v555 = vunpack.c.l.b16 %v461
        %v556 = vunpack.c.l.b16 %v462
        %v557 = vunpack.c.h.b16 %v462
        %v558 = vunpack.c.l.b16 %v463
        %v559 = vunpack.c.l.b16 %v464
        %v560 = vunpack.c.h.b16 %v464
        %v561 = vunpack.c.l.b16 %v465
        %v562 = vunpack.c.l.b16 %v466
        %v563 = vunpack.c.h.b16 %v466
        %v564 = vunpack.c.l.b16 %v467
        %v565 = vpack.c.b16 %v520, %v517
        %v566 = vpack.c.b16 %v521, %v518
        %v567 = vpack.c.b16 %v522, %v519
        %v568 = vpack.c.b16 %v526, %v523
        %v569 = vpack.c.b16 %v527, %v524
        %v570 = vpack.c.b16 %v528, %v525
        %v571 = vpack.c.b16 %v532, %v529
        %v572 = vpack.c.b16 %v533, %v530
        %v573 = vpack.c.b16 %v534, %v531
        %v574 = vpack.c.b16 %v538, %v535
        %v575 = vpack.c.b16 %v539, %v536
        %v576 = vpack.c.b16 %v540, %v537
        %v577 = vpack.c.b16 %v544, %v541
        %v578 = vpack.c.b16 %v545, %v542
        %v579 = vpack.c.b16 %v546, %v543
        %v580 = vpack.c.b16 %v550, %v547
        %v581 = vpack.c.b16 %v551, %v548
        %v582 = vpack.c.b16 %v552, %v549
        %v583 = vpack.c.b16 %v556, %v553
        %v584 = vpack.c.b16 %v557, %v554
        %v585 = vpack.c.b16 %v558, %v555
        %v586 = vpack.c.b16 %v562, %v559
        %v587 = vpack.c.b16 %v563, %v560
        %v588 = vpack.c.b16 %v564, %v561
        %613 = vmatprep.subr.bf16.mxu0 %v566
        %614 = vmatpush1.bf16.msra.mxu0 %v565
        %615 = vmatprep.subr.bf16.mxu0 %v569
        %616 = vmatpush1.bf16.msra.mxu0 %v568
        %617 = vmatprep.subr.bf16.mxu0 %v572
        %618 = vmatpush1.bf16.msra.mxu0 %v571
        %619 = vmatprep.subr.bf16.mxu0 %v575
        %620 = vmatpush1.bf16.msra.mxu0 %v574
        %621 = vmatprep.subr.bf16.mxu0 %v578
        %622 = vmatpush1.bf16.msra.mxu0 %v577
        %623 = vmatprep.subr.bf16.mxu0 %v581
        %624 = vmatpush1.bf16.msra.mxu0 %v580
        %625 = vmatprep.subr.bf16.mxu0 %v584
        %626 = vmatpush1.bf16.msra.mxu0 %v583
        %627 = vmatprep.subr.bf16.mxu0 %v587
        %628 = vmatpush1.bf16.msra.mxu0 %v586
        %629 = vmatprep.subr.bf16.mxu0 0
        %630 = vmatpush1.bf16.msra.mxu0 0
        %631 = vmatprep.subr.bf16.mxu0 0
        %632 = vmatpush1.bf16.msra.mxu0 0
        %633 = vmatprep.subr.bf16.mxu0 0
        %634 = vmatpush1.bf16.msra.mxu0 0
        %635 = vmatprep.subr.bf16.mxu0 0
        %636 = vmatpush1.bf16.msra.mxu0 0
        %637 = vmatprep.subr.bf16.mxu0 0
        %638 = vmatpush1.bf16.msra.mxu0 0
        %639 = vmatprep.subr.bf16.mxu0 0
        %640 = vmatpush1.bf16.msra.mxu0 0
        %641 = vmatprep.subr.bf16.mxu0 0
        %642 = vmatpush1.bf16.msra.mxu0 0
        %643 = vmatprep.subr.bf16.mxu0 0
        %644 = vmatpush1.bf16.msra.mxu0 0
        %645 = vmatprep.mubr.bf16.mxu0 0
        %646 = vmatmul.mubr.bf16.gmra.mrb[0].mxu0 %v435
        %v647 = vpop.f32.mrb[0].mxu0
        %v648 = vadd.f32 %v473, %v647
        %v649 = vpop.f32.mrb[0].mxu0
        %v650 = vadd.f32 %v477, %v649
        %v651 = vpop.f32.mrb[0].mxu0
        %v652 = vpop.f32.mrb[0].mxu0
        %653 = vdwg.mxu0
        %654 = vmatprep.subr.bf16.mxu0 0
        %655 = vmatpush1.bf16.msra.mxu0 %v567
        %656 = vmatprep.subr.bf16.mxu0 0
        %657 = vmatpush1.bf16.msra.mxu0 %v570
        %658 = vmatprep.subr.bf16.mxu0 0
        %659 = vmatpush1.bf16.msra.mxu0 %v573
        %660 = vmatprep.subr.bf16.mxu0 0
        %661 = vmatpush1.bf16.msra.mxu0 %v576
        %662 = vmatprep.subr.bf16.mxu0 0
        %663 = vmatpush1.bf16.msra.mxu0 %v579
        %664 = vmatprep.subr.bf16.mxu0 0
        %665 = vmatpush1.bf16.msra.mxu0 %v582
        %666 = vmatprep.subr.bf16.mxu0 0
        %667 = vmatpush1.bf16.msra.mxu0 %v585
        %668 = vmatprep.subr.bf16.mxu0 0
        %669 = vmatpush1.bf16.msra.mxu0 %v588
        %670 = vmatprep.subr.bf16.mxu0 0
        %671 = vmatpush1.bf16.msra.mxu0 0
        %672 = vmatprep.subr.bf16.mxu0 0
        %673 = vmatpush1.bf16.msra.mxu0 0
        %674 = vmatprep.subr.bf16.mxu0 0
        %675 = vmatpush1.bf16.msra.mxu0 0
        %676 = vmatprep.subr.bf16.mxu0 0
        %677 = vmatpush1.bf16.msra.mxu0 0
        %678 = vmatprep.subr.bf16.mxu0 0
        %679 = vmatpush1.bf16.msra.mxu0 0
        %680 = vmatprep.subr.bf16.mxu0 0
        %681 = vmatpush1.bf16.msra.mxu0 0
        %682 = vmatprep.subr.bf16.mxu0 0
        %683 = vmatpush1.bf16.msra.mxu0 0
        %684 = vmatprep.subr.bf16.mxu0 0
        %685 = vmatpush1.bf16.msra.mxu0 0
        %686 = vmatprep.mubr.bf16.mxu0 0
        %687 = vmatmul.mubr.bf16.gmra.mrb[0].mxu0 %v435
        %v688 = vpop.f32.mrb[0].mxu0
        %v689 = vadd.f32 %v481, %v688
        %v690 = vpop.f32.mrb[0].mxu0
        %v691 = vpop.f32.mrb[0].mxu0
        %v692 = vpop.f32.mrb[0].mxu0
        %693 = vdwg.mxu0
        %v694 = vpack.c.bf16 %v648, %v648
        %v695 = vpack.c.bf16 %v650, %v650
        %696 = vmatprep.subr.bf16.mxu0 0
        %697 = vmatpush1.bf16.xpose.msra.mxu0 %v695
        %698 = vmatprep.subr.bf16.mxu0 0
        %699 = vmatpush1.bf16.xpose.msra.mxu0 0
        %700 = vmatprep.subr.bf16.mxu0 0
        %701 = vmatpush1.bf16.xpose.msra.mxu0 0
        %702 = vmatprep.subr.bf16.mxu0 0
        %703 = vmatpush1.bf16.xpose.msra.mxu0 0
        %704 = vmatprep.subr.bf16.mxu0 0
        %705 = vmatpush1.bf16.xpose.msra.mxu0 0
        %706 = vmatprep.subr.bf16.mxu0 0
        %707 = vmatpush1.bf16.xpose.msra.mxu0 0
        %708 = vmatprep.subr.bf16.mxu0 0
        %709 = vmatpush1.bf16.xpose.msra.mxu0 0
        %710 = vmatprep.subr.bf16.mxu0 0
        %711 = vmatpush1.bf16.xpose.msra.mxu0 0
        %712 = vmatprep.subr.bf16.mxu0 0
        %713 = vmatpush1.bf16.xpose.msra.mxu0 0
        %714 = vmatprep.subr.bf16.mxu0 0
        %715 = vmatpush1.bf16.xpose.msra.mxu0 0
        %716 = vmatprep.subr.bf16.mxu0 0
        %717 = vmatpush1.bf16.xpose.msra.mxu0 0
        %718 = vmatprep.subr.bf16.mxu0 0
        %719 = vmatpush1.bf16.xpose.msra.mxu0 0
        %720 = vmatprep.subr.bf16.mxu0 0
        %721 = vmatpush1.bf16.xpose.msra.mxu0 0
        %722 = vmatprep.subr.bf16.mxu0 0
        %723 = vmatpush1.bf16.xpose.msra.mxu0 0
        %724 = vmatprep.subr.bf16.mxu0 0
        %725 = vmatpush1.bf16.xpose.msra.mxu0 0
        %726 = vmatprep.subr.bf16.mxu0 0
        %727 = vmatpush1.bf16.xpose.msra.mxu0 0
        %728 = vmatprep.mubr.bf16.mxu0 0
        %729 = vmatmul.mubr.bf16.gmra.mrb[0].mxu0 %v694
        %v730 = vpop.f32.mrb[0].mxu0
        %v731 = vadd.f32 0.0, %v730
        %v732 = vpop.f32.mrb[0].mxu0
        %v733 = vpop.f32.mrb[0].mxu0
        %v734 = vpop.f32.mrb[0].mxu0
        %735 = vdwg.mxu0
        %vm736 = vcmask 64512
        %v737 = vsel %vm736, %v731, -inf
        %738 = vmax.xlane.f32.xlu0 %v737
        %v739 = vpop.xlane.xlu0 %738
        %v740 = vsub.f32 %v731, %v739
        %v741 = vmul.f32 %v740, 1.442695
        %v742 = vpow.pop %v741
        %v743 = vsel %vm736, %v742, 0.0
        %744 = vadd.xlane.f32.xlu0 %v743
        %v745 = vpop.xlane.xlu0 %744
        %v746 = vrcp.pop %v745
        %v747 = vmul.f32 %v742, %v746
        %v748 = vpack.c.bf16 %v747, %v747
        %v749 = vpack.c.bf16 %v689, %v689
        %v751 = vsel %vm736, %v748, 0
        %vm753 = vcmask 1043456
        %v755 = vsel %vm753, %v749, 0
        %757 = vmatprep.subr.bf16.mxu0 0
        %758 = vmatpush1.bf16.msra.mxu0 %v755
        %759 = vmatprep.subr.bf16.mxu0 0
        %760 = vmatpush1.bf16.msra.mxu0 0
        %761 = vmatprep.subr.bf16.mxu0 0
        %762 = vmatpush1.bf16.msra.mxu0 0
        %763 = vmatprep.subr.bf16.mxu0 0
        %764 = vmatpush1.bf16.msra.mxu0 0
        %765 = vmatprep.subr.bf16.mxu0 0
        %766 = vmatpush1.bf16.msra.mxu0 0
        %767 = vmatprep.subr.bf16.mxu0 0
        %768 = vmatpush1.bf16.msra.mxu0 0
        %769 = vmatprep.subr.bf16.mxu0 0
        %770 = vmatpush1.bf16.msra.mxu0 0
        %771 = vmatprep.subr.bf16.mxu0 0
        %772 = vmatpush1.bf16.msra.mxu0 0
        %773 = vmatprep.subr.bf16.mxu0 0
        %774 = vmatpush1.bf16.msra.mxu0 0
        %775 = vmatprep.subr.bf16.mxu0 0
        %776 = vmatpush1.bf16.msra.mxu0 0
        %777 = vmatprep.subr.bf16.mxu0 0
        %778 = vmatpush1.bf16.msra.mxu0 0
        %779 = vmatprep.subr.bf16.mxu0 0
        %780 = vmatpush1.bf16.msra.mxu0 0
        %781 = vmatprep.subr.bf16.mxu0 0
        %782 = vmatpush1.bf16.msra.mxu0 0
        %783 = vmatprep.subr.bf16.mxu0 0
        %784 = vmatpush1.bf16.msra.mxu0 0
        %785 = vmatprep.subr.bf16.mxu0 0
        %786 = vmatpush1.bf16.msra.mxu0 0
        %787 = vmatprep.subr.bf16.mxu0 0
        %788 = vmatpush1.bf16.msra.mxu0 0
        %789 = vmatprep.mubr.bf16.mxu0 0
        %790 = vmatmul.mubr.bf16.gmra.mrb[0].mxu0 %v751
        %v791 = vpop.f32.mrb[0].mxu0
        %v792 = vadd.f32 0.0, %v791
        %v793 = vpop.f32.mrb[0].mxu0
        %v794 = vpop.f32.mrb[0].mxu0
        %v795 = vpop.f32.mrb[0].mxu0
        %796 = vdwg.mxu0
        %v797 = vpack.c.bf16 %v792, %v792
        %v798 = vld [vmem:[#allocation7] sm:$0xf]
        %v799 = vld [vmem:[#allocation7 + $0x4] sm:$0xf]
        %v800 = vld [vmem:[#allocation7 + $0x8] sm:$0xf]
        %v801 = vld [vmem:[#allocation7 + $0xc] sm:$0xf]
        %v802 = vld [vmem:[#allocation7 + $0x10] sm:$0xf]
        %v803 = vld [vmem:[#allocation7 + $0x14] sm:$0xf]
        %v804 = vld [vmem:[#allocation7 + $0x18] sm:$0xf]
        %v805 = vld [vmem:[#allocation7 + $0x1c] sm:$0xf]
        %v806 = vld [vmem:[#allocation7 + $0x20] sm:$0xf]
        %v807 = vld [vmem:[#allocation7 + $0x24] sm:$0xf]
        %v808 = vld [vmem:[#allocation7 + $0x28] sm:$0xf]
        %v809 = vld [vmem:[#allocation7 + $0x2c] sm:$0xf]
        %v810 = vld [vmem:[#allocation7 + $0x30] sm:$0xf]
        %v811 = vld [vmem:[#allocation7 + $0x34] sm:$0xf]
        %v812 = vld [vmem:[#allocation7 + $0x38] sm:$0xf]
        %v813 = vld [vmem:[#allocation7 + $0x3c] sm:$0xf]
        %v814 = vld [vmem:[%s4] sm:$0x1]
        %v816 = vlaneseq
        %v817 = vshrl.u32 %v816, 7
        %v818 = vsub.s32 0, %v817
        %v819 = vrot.slane %v814, %v818
        %v837 = vunpack.c.l.b16 %v798
        %v838 = vunpack.c.l.b16 %v799
        %v839 = vunpack.c.l.b16 %v800
        %v840 = vunpack.c.l.b16 %v801
        %v841 = vunpack.c.l.b16 %v802
        %v842 = vunpack.c.l.b16 %v803
        %v843 = vunpack.c.l.b16 %v804
        %v844 = vunpack.c.l.b16 %v805
        %v845 = vunpack.c.l.b16 %v806
        %v846 = vunpack.c.l.b16 %v807
        %v847 = vunpack.c.l.b16 %v808
        %v848 = vunpack.c.l.b16 %v809
        %v849 = vunpack.c.l.b16 %v810
        %v850 = vunpack.c.l.b16 %v811
        %v851 = vunpack.c.l.b16 %v812
        %v852 = vunpack.c.l.b16 %v813
        %v853 = vpack.c.b16 %v838, %v837
        %v854 = vpack.c.b16 %v840, %v839
        %v855 = vpack.c.b16 %v842, %v841
        %v856 = vpack.c.b16 %v844, %v843
        %v857 = vpack.c.b16 %v846, %v845
        %v858 = vpack.c.b16 %v848, %v847
        %v859 = vpack.c.b16 %v850, %v849
        %v860 = vpack.c.b16 %v852, %v851
        %869 = vmatprep.subr.bf16.mxu0 0
        %870 = vmatpush1.bf16.msra.mxu0 %v853
        %871 = vmatprep.subr.bf16.mxu0 0
        %872 = vmatpush1.bf16.msra.mxu0 %v854
        %873 = vmatprep.subr.bf16.mxu0 0
        %874 = vmatpush1.bf16.msra.mxu0 %v855
        %875 = vmatprep.subr.bf16.mxu0 0
        %876 = vmatpush1.bf16.msra.mxu0 %v856
        %877 = vmatprep.subr.bf16.mxu0 0
        %878 = vmatpush1.bf16.msra.mxu0 %v857
        %879 = vmatprep.subr.bf16.mxu0 0
        %880 = vmatpush1.bf16.msra.mxu0 %v858
        %881 = vmatprep.subr.bf16.mxu0 0
        %882 = vmatpush1.bf16.msra.mxu0 %v859
        %883 = vmatprep.subr.bf16.mxu0 0
        %884 = vmatpush1.bf16.msra.mxu0 %v860
        %885 = vmatprep.subr.bf16.mxu0 0
        %886 = vmatpush1.bf16.msra.mxu0 0
        %887 = vmatprep.subr.bf16.mxu0 0
        %888 = vmatpush1.bf16.msra.mxu0 0
        %889 = vmatprep.subr.bf16.mxu0 0
        %890 = vmatpush1.bf16.msra.mxu0 0
        %891 = vmatprep.subr.bf16.mxu0 0
        %892 = vmatpush1.bf16.msra.mxu0 0
        %893 = vmatprep.subr.bf16.mxu0 0
        %894 = vmatpush1.bf16.msra.mxu0 0
        %895 = vmatprep.subr.bf16.mxu0 0
        %896 = vmatpush1.bf16.msra.mxu0 0
        %897 = vmatprep.subr.bf16.mxu0 0
        %898 = vmatpush1.bf16.msra.mxu0 0
        %899 = vmatprep.subr.bf16.mxu0 0
        %900 = vmatpush1.bf16.msra.mxu0 0
        %901 = vmatprep.mubr.bf16.mxu0 0
        %902 = vmatmul.mubr.bf16.gmra.mrb[0].mxu0 %v797
        %v903 = vpop.f32.mrb[0].mxu0
        %v904 = vadd.f32 %v819, %v903
        %v905 = vpop.f32.mrb[0].mxu0
        %v906 = vpop.f32.mrb[0].mxu0
        %v907 = vpop.f32.mrb[0].mxu0
        %908 = vdwg.mxu0
        %v909 = vadd.f32 %v434, %v904
        %v910 = vld [vmem:[%s9] sm:$0x1]
        %v911 = vld [vmem:[%s9 + $0x1] sm:$0x1]
        %912 = vadd.xlane.f32.xlu0 %v909
        %v913 = vpop.xlane.xlu0 %912
        %v914 = vmul.f32 %v913, 0.03125
        %v915 = vmul.f32 %v909, %v909
        %916 = vadd.xlane.f32.xlu0 %v915
        %v917 = vpop.xlane.xlu0 %916
        %v918 = vmul.f32 %v917, 0.03125
        %v919 = vmul.f32 %v914, %v914
        %v920 = vsub.f32 %v918, %v919
        %v921 = vsub.f32 %v909, %v914
        %v922 = vadd.f32 %v920, 1e-05
        %v923 = vrsqrt.pop %v922
        %v924 = vmul.f32 %v921, %v923
        %v925 = vlaneseq
        %v926 = vshrl.u32 %v925, 7
        %v927 = vsub.s32 0, %v926
        %v928 = vrot.slane %v910, %v927
        %v929 = vmul.f32 %v924, %v928
        %v930 = vlaneseq
        %v931 = vshrl.u32 %v930, 7
        %v932 = vsub.s32 0, %v931
        %v933 = vrot.slane %v911, %v932
        %v934 = vadd.f32 %v929, %v933
        %v935 = vpack.c.bf16 %v934, %v934
        %v936 = vld [vmem:[#allocation8] sm:$0xf]
        %v937 = vld [vmem:[#allocation8 + $0x4] sm:$0xf]
        %v938 = vld [vmem:[#allocation8 + $0x8] sm:$0xf]
        %v939 = vld [vmem:[#allocation8 + $0xc] sm:$0xf]
        %v940 = vld [vmem:[#allocation8 + $0x10] sm:$0xf]
        %v941 = vld [vmem:[#allocation8 + $0x14] sm:$0xf]
        %v942 = vld [vmem:[#allocation8 + $0x18] sm:$0xf]
        %v943 = vld [vmem:[#allocation8 + $0x1c] sm:$0xf]
        %v944 = vld [vmem:[#allocation8 + $0x20] sm:$0xf]
        %v945 = vld [vmem:[#allocation8 + $0x24] sm:$0xf]
        %v946 = vld [vmem:[#allocation8 + $0x28] sm:$0xf]
        %v947 = vld [vmem:[#allocation8 + $0x2c] sm:$0xf]
        %v948 = vld [vmem:[#allocation8 + $0x30] sm:$0xf]
        %v949 = vld [vmem:[#allocation8 + $0x34] sm:$0xf]
        %v950 = vld [vmem:[#allocation8 + $0x38] sm:$0xf]
        %v951 = vld [vmem:[#allocation8 + $0x3c] sm:$0xf]
        %v952 = vld [vmem:[%s6] sm:$0x1]
        %v954 = vlaneseq
        %v955 = vshrl.u32 %v954, 7
        %v956 = vsub.s32 0, %v955
        %v957 = vrot.slane %v952, %v956
        %v975 = vunpack.c.l.b16 %v936
        %v976 = vunpack.c.l.b16 %v937
        %v977 = vunpack.c.l.b16 %v938
        %v978 = vunpack.c.l.b16 %v939
        %v979 = vunpack.c.l.b16 %v940
        %v980 = vunpack.c.l.b16 %v941
        %v981 = vunpack.c.l.b16 %v942
        %v982 = vunpack.c.l.b16 %v943
        %v983 = vunpack.c.l.b16 %v944
        %v984 = vunpack.c.l.b16 %v945
        %v985 = vunpack.c.l.b16 %v946
        %v986 = vunpack.c.l.b16 %v947
        %v987 = vunpack.c.l.b16 %v948
        %v988 = vunpack.c.l.b16 %v949
        %v989 = vunpack.c.l.b16 %v950
        %v990 = vunpack.c.l.b16 %v951
        %v991 = vpack.c.b16 %v976, %v975
        %v992 = vpack.c.b16 %v978, %v977
        %v993 = vpack.c.b16 %v980, %v979
        %v994 = vpack.c.b16 %v982, %v981
        %v995 = vpack.c.b16 %v984, %v983
        %v996 = vpack.c.b16 %v986, %v985
        %v997 = vpack.c.b16 %v988, %v987
        %v998 = vpack.c.b16 %v990, %v989
        %1007 = vmatprep.subr.bf16.mxu0 0
        %1008 = vmatpush1.bf16.msra.mxu0 %v991
        %1009 = vmatprep.subr.bf16.mxu0 0
        %1010 = vmatpush1.bf16.msra.mxu0 %v992
        %1011 = vmatprep.subr.bf16.mxu0 0
        %1012 = vmatpush1.bf16.msra.mxu0 %v993
        %1013 = vmatprep.subr.bf16.mxu0 0
        %1014 = vmatpush1.bf16.msra.mxu0 %v994
        %1015 = vmatprep.subr.bf16.mxu0 0
        %1016 = vmatpush1.bf16.msra.mxu0 %v995
        %1017 = vmatprep.subr.bf16.mxu0 0
        %1018 = vmatpush1.bf16.msra.mxu0 %v996
        %1019 = vmatprep.subr.bf16.mxu0 0
        %1020 = vmatpush1.bf16.msra.mxu0 %v997
        %1021 = vmatprep.subr.bf16.mxu0 0
        %1022 = vmatpush1.bf16.msra.mxu0 %v998
        %1023 = vmatprep.subr.bf16.mxu0 0
        %1024 = vmatpush1.bf16.msra.mxu0 0
        %1025 = vmatprep.subr.bf16.mxu0 0
        %1026 = vmatpush1.bf16.msra.mxu0 0
        %1027 = vmatprep.subr.bf16.mxu0 0
        %1028 = vmatpush1.bf16.msra.mxu0 0
        %1029 = vmatprep.subr.bf16.mxu0 0
        %1030 = vmatpush1.bf16.msra.mxu0 0
        %1031 = vmatprep.subr.bf16.mxu0 0
        %1032 = vmatpush1.bf16.msra.mxu0 0
        %1033 = vmatprep.subr.bf16.mxu0 0
        %1034 = vmatpush1.bf16.msra.mxu0 0
        %1035 = vmatprep.subr.bf16.mxu0 0
        %1036 = vmatpush1.bf16.msra.mxu0 0
        %1037 = vmatprep.subr.bf16.mxu0 0
        %1038 = vmatpush1.bf16.msra.mxu0 0
        %1039 = vmatprep.mubr.bf16.mxu0 0
        %1040 = vmatmul.mubr.bf16.gmra.mrb[0].mxu0 %v935
        %v1041 = vpop.f32.mrb[0].mxu0
        %v1042 = vadd.f32 %v957, %v1041
        %v1043 = vpop.f32.mrb[0].mxu0
        %v1044 = vpop.f32.mrb[0].mxu0
        %v1045 = vpop.f32.mrb[0].mxu0
        %1046 = vdwg.mxu0
        %v1047 = vmax.f32 %v1042, 0.0
        %v1048 = vpack.c.bf16 %v1047, %v1047
        %v1049 = vld [vmem:[#allocation10] sm:$0xf]
        %v1050 = vld [vmem:[#allocation10 + $0x4] sm:$0xf]
        %v1051 = vld [vmem:[#allocation10 + $0x8] sm:$0xf]
        %v1052 = vld [vmem:[#allocation10 + $0xc] sm:$0xf]
        %v1053 = vld [vmem:[#allocation10 + $0x10] sm:$0xf]
        %v1054 = vld [vmem:[#allocation10 + $0x14] sm:$0xf]
        %v1055 = vld [vmem:[#allocation10 + $0x18] sm:$0xf]
        %v1056 = vld [vmem:[#allocation10 + $0x1c] sm:$0xf]
        %v1057 = vld [vmem:[#allocation10 + $0x20] sm:$0xf]
        %v1058 = vld [vmem:[#allocation10 + $0x24] sm:$0xf]
        %v1059 = vld [vmem:[#allocation10 + $0x28] sm:$0xf]
        %v1060 = vld [vmem:[#allocation10 + $0x2c] sm:$0xf]
        %v1061 = vld [vmem:[#allocation10 + $0x30] sm:$0xf]
        %v1062 = vld [vmem:[#allocation10 + $0x34] sm:$0xf]
        %v1063 = vld [vmem:[#allocation10 + $0x38] sm:$0xf]
        %v1064 = vld [vmem:[#allocation10 + $0x3c] sm:$0xf]
        %v1065 = vld [vmem:[%s8] sm:$0x1]
        %v1067 = vlaneseq
        %v1068 = vshrl.u32 %v1067, 7
        %v1069 = vsub.s32 0, %v1068
        %v1070 = vrot.slane %v1065, %v1069
        %v1088 = vunpack.c.l.b16 %v1049
        %v1089 = vunpack.c.l.b16 %v1050
        %v1090 = vunpack.c.l.b16 %v1051
        %v1091 = vunpack.c.l.b16 %v1052
        %v1092 = vunpack.c.l.b16 %v1053
        %v1093 = vunpack.c.l.b16 %v1054
        %v1094 = vunpack.c.l.b16 %v1055
        %v1095 = vunpack.c.l.b16 %v1056
        %v1096 = vunpack.c.l.b16 %v1057
        %v1097 = vunpack.c.l.b16 %v1058
        %v1098 = vunpack.c.l.b16 %v1059
        %v1099 = vunpack.c.l.b16 %v1060
        %v1100 = vunpack.c.l.b16 %v1061
        %v1101 = vunpack.c.l.b16 %v1062
        %v1102 = vunpack.c.l.b16 %v1063
        %v1103 = vunpack.c.l.b16 %v1064
        %v1104 = vpack.c.b16 %v1089, %v1088
        %v1105 = vpack.c.b16 %v1091, %v1090
        %v1106 = vpack.c.b16 %v1093, %v1092
        %v1107 = vpack.c.b16 %v1095, %v1094
        %v1108 = vpack.c.b16 %v1097, %v1096
        %v1109 = vpack.c.b16 %v1099, %v1098
        %v1110 = vpack.c.b16 %v1101, %v1100
        %v1111 = vpack.c.b16 %v1103, %v1102
        %1120 = vmatprep.subr.bf16.mxu0 0
        %1121 = vmatpush1.bf16.msra.mxu0 %v1104
        %1122 = vmatprep.subr.bf16.mxu0 0
        %1123 = vmatpush1.bf16.msra.mxu0 %v1105
        %1124 = vmatprep.subr.bf16.mxu0 0
        %1125 = vmatpush1.bf16.msra.mxu0 %v1106
        %1126 = vmatprep.subr.bf16.mxu0 0
        %1127 = vmatpush1.bf16.msra.mxu0 %v1107
        %1128 = vmatprep.subr.bf16.mxu0 0
        %1129 = vmatpush1.bf16.msra.mxu0 %v1108
        %1130 = vmatprep.subr.bf16.mxu0 0
        %1131 = vmatpush1.bf16.msra.mxu0 %v1109
        %1132 = vmatprep.subr.bf16.mxu0 0
        %1133 = vmatpush1.bf16.msra.mxu0 %v1110
        %1134 = vmatprep.subr.bf16.mxu0 0
        %1135 = vmatpush1.bf16.msra.mxu0 %v1111
        %1136 = vmatprep.subr.bf16.mxu0 0
        %1137 = vmatpush1.bf16.msra.mxu0 0
        %1138 = vmatprep.subr.bf16.mxu0 0
        %1139 = vmatpush1.bf16.msra.mxu0 0
        %1140 = vmatprep.subr.bf16.mxu0 0
        %1141 = vmatpush1.bf16.msra.mxu0 0
        %1142 = vmatprep.subr.bf16.mxu0 0
        %1143 = vmatpush1.bf16.msra.mxu0 0
        %1144 = vmatprep.subr.bf16.mxu0 0
        %1145 = vmatpush1.bf16.msra.mxu0 0
        %1146 = vmatprep.subr.bf16.mxu0 0
        %1147 = vmatpush1.bf16.msra.mxu0 0
        %1148 = vmatprep.subr.bf16.mxu0 0
        %1149 = vmatpush1.bf16.msra.mxu0 0
        %1150 = vmatprep.subr.bf16.mxu0 0
        %1151 = vmatpush1.bf16.msra.mxu0 0
        %1152 = vmatprep.mubr.bf16.mxu0 0
        %1153 = vmatmul.mubr.bf16.gmra.mrb[0].mxu0 %v1048
        %v1154 = vpop.f32.mrb[0].mxu0
        %v1155 = vadd.f32 %v1070, %v1154
        %v1156 = vpop.f32.mrb[0].mxu0
        %v1157 = vpop.f32.mrb[0].mxu0
        %v1158 = vpop.f32.mrb[0].mxu0
        %1159 = vdwg.mxu0
        %v1160 = vadd.f32 %v934, %v1155
        %v1161 = vld [vmem:[%s9 + $0x2] sm:$0x1]
        %v1162 = vld [vmem:[%s9 + $0x3] sm:$0x1]
        %1163 = vadd.xlane.f32.xlu0 %v1160
        %v1164 = vpop.xlane.xlu0 %1163
        %v1165 = vmul.f32 %v1164, 0.03125
        %v1166 = vmul.f32 %v1160, %v1160
        %1167 = vadd.xlane.f32.xlu0 %v1166
        %v1168 = vpop.xlane.xlu0 %1167
        %v1169 = vmul.f32 %v1168, 0.03125
        %v1170 = vmul.f32 %v1165, %v1165
        %v1171 = vsub.f32 %v1169, %v1170
        %v1172 = vsub.f32 %v1160, %v1165
        %v1173 = vadd.f32 %v1171, 1e-05
        %v1174 = vrsqrt.pop %v1173
        %v1175 = vmul.f32 %v1172, %v1174
        %v1176 = vlaneseq
        %v1177 = vshrl.u32 %v1176, 7
        %v1178 = vsub.s32 0, %v1177
        %v1179 = vrot.slane %v1161, %v1178
        %v1180 = vmul.f32 %v1175, %v1179
        %v1181 = vlaneseq
        %v1182 = vshrl.u32 %v1181, 7
        %v1183 = vsub.s32 0, %v1182
        %v1184 = vrot.slane %v1162, %v1183
        %v1185 = vadd.f32 %v1180, %v1184
        %1186 = vst [vmem:[%s432] sm:$0xff] %v1185
        %s1187 = sand.u32 %s252, 1
        %s1188 = scalar_lea.sflag [#allocation4], %s1187
        %s1189 = sand.u32 %s252, 1
        %s1190 = smul.addr %s1189, 8
        %s1191 = scalar_lea.vmem [#allocation11], %s1190
        // Predicated region
        $region81: #{tpu_custom_call.1} parent=59 // pred_check
          %p1192 = pneg %p262
        $region82: #{tpu_custom_call.1} parent=59 // pred_check_branch
          %1194 = sbr.rel (%p1192) target = $region84
        $region83: #{tpu_custom_call.1} parent=59 // pred_region
          %s1196 = ssub.s32 128, 128
          %1197 = vsyncadd %s1188, %s1196
          %s1198 = smul.addr %s29, 128
          %s1199 = scalar_lea.hbm %s10, %s1198
          %s1201 = sshll.u32 %s1191, 4
          %s1202 = int_to_ptr.vmem [resolvable:$true] %s1201
          %1204 = dma.vmem_to_hbm [thread:$0]  %s1202, 128, %s1199, %s1188
        $region84: #{tpu_custom_call.1} parent=59 // pred_fallthru
          _
      $region60: #{tpu_custom_call.1} parent=5 // pred_fallthru
        _
      %p1205 = scmp.le.s32.totalorder 2, %s24
      // Predicated region
      $region85: #{tpu_custom_call.1} parent=5 // pred_check
        %p1206 = pneg %p1205
      $region86: #{tpu_custom_call.1} parent=5 // pred_check_branch
        %1208 = sbr.rel (%p1206) target = $region88
      $region87: #{tpu_custom_call.1} parent=5 // pred_region
        %s1209 = ssub.s32 %s24, 2
        // Predicated region
        $region89: #{tpu_custom_call.1} parent=87 // pred_check
          %p1210 = pneg %p268
        $region90: #{tpu_custom_call.1} parent=87 // pred_check_branch
          %1212 = sbr.rel (%p1210) target = $region92
        $region91: #{tpu_custom_call.1} parent=87 // pred_region
          %s1213 = sand.u32 %s253, 1
          %s1214 = scalar_lea.sflag [#allocation4], %s1213
          %s1215 = sand.u32 %s253, 1
          %s1216 = smul.addr %s1215, 8
          %s1217 = scalar_lea.vmem [#allocation11], %s1216
          %1218 = dma.done %s1214, 128
        $region92: #{tpu_custom_call.1} parent=87 // pred_fallthru
          _
      $region88: #{tpu_custom_call.1} parent=5 // pred_fallthru
        _
    $region6: #{tpu_custom_call.1} parent=1 // loop_footer
      %s28 = sadd.s32 1, %s24
    $region7: #{tpu_custom_call.1} parent=1 // loop_footer_branch
      %23 = sbr.rel target = $region3
    $region8: #{tpu_custom_call.1} parent=1 // loop_exit
      _
    %1219 = vsyncpa [#allocation3], 1
    %s1220 = scalar_lea.sflag [#allocation3], 1
    %1221 = vsyncpa %s1220, 1
    %1222 = vsyncpa [#allocation6], 1
    %1223 = vsyncpa [#allocation9], 1
    %1224 = vsyncpa [#allocation4], 1
    %s1225 = scalar_lea.sflag [#allocation4], 1
    %1226 = vsyncpa %s1225, 1

</llo_original>
